<compile_context>
chip_gen: v7x
topology: tpu7x:2x2x1
jax: 0.10.0
libtpu: 0.0.40
codegen_flags: <defaults>
</compile_context>

<pallas_src>
import math

import jax
import jax.numpy as jnp
from jax.experimental import pallas as pl
from jax.experimental.pallas import tpu as pltpu

NUM_HEADS = 8
LN_EPS = 1e-5  # PyTorch nn.LayerNorm default


def _layernorm(x, gamma, beta):
    mu = jnp.mean(x, axis=-1, keepdims=True)
    var = jnp.mean((x - mu) ** 2, axis=-1, keepdims=True)
    return (x - mu) * jax.lax.rsqrt(var + LN_EPS) * gamma + beta


def mha_kernel(q_ref, k_ref, v_ref,
               wq_ref, wk_ref, wv_ref, wo_ref, bo_ref,
               g1_ref, b1_ref, g2_ref, b2_ref,
               o_ref,
               kp_ref, vp_ref, attn_ref):
    """One grid step = one (batch, query-tile).  Heads are an unrolled loop."""
    cdt = wq_ref.dtype                       # MXU compute dtype (bf16 here)
    D = o_ref.shape[-1]                      # out_dim
    hd = D // NUM_HEADS

    # --- K/V projections: once per batch element, cached in bf16 VMEM. ------
    # Valid only because the qi axis is "arbitrary" (sequential within a batch
    # on each core) — see dimension_semantics in the wrapper.
    @pl.when(pl.program_id(1) == 0)
    def _():
        # 1/sqrt(out_dim) is already folded into wk host-side.
        kp_ref[...] = jnp.dot(k_ref[...], wk_ref[...],
                              preferred_element_type=jnp.float32).astype(cdt)
        vp_ref[...] = jnp.dot(v_ref[...], wv_ref[...],
                              preferred_element_type=jnp.float32).astype(cdt)

    # --- Full-width (lane-dense, N = D) query projection for this tile. -----
    qp = jnp.dot(q_ref[...], wq_ref[...],
                 preferred_element_type=jnp.float32)          # (TQ, D) f32
    qp_c = qp.astype(cdt)                                     # cast once
    kp = kp_ref[...]                                          # (Nk, D) bf16
    vp = vp_ref[...]                                          # (Nk, D) bf16

    # --- Per-head attention.  Static Python loop => static lane offsets;  ---
    # (a lax.fori_loop would need dynamic lane slicing, which is not reliably
    #  lowerable for head_dim that is not a multiple of 128).
    for h in range(NUM_HEADS):
        sl = slice(h * hd, (h + 1) * hd)
        # QK^T as an NT dot_general (contract the last dims, no transpose).
        logits = jax.lax.dot_general(
            qp_c[:, sl], kp[:, sl],
            dimension_numbers=(((1,), (1,)), ((), ())),
            preferred_element_type=jnp.float32)               # (TQ, Nk) f32
        # Softmax in f32; normalization via the EUP reciprocal.
        m = jnp.max(logits, axis=-1, keepdims=True)
        p = jnp.exp(logits - m)
        a = p * pl.reciprocal(jnp.sum(p, axis=-1, keepdims=True), approx=True)
        # A @ V for this head, written straight into the lane-dense scratch.
        attn_ref[:, sl] = jnp.dot(a.astype(cdt), vp[:, sl],
                                  preferred_element_type=jnp.float32)

    # --- Epilogue (every tile): ln1(q + attn), then ln2(x + relu(fc_out(x))).
    x = _layernorm(qp + attn_ref[...], g1_ref[...], b1_ref[...])
    y = jnp.dot(x.astype(cdt), wo_ref[...],
                preferred_element_type=jnp.float32) + bo_ref[...]
    y = jnp.maximum(y, 0.0)
    o_ref[...] = _layernorm(x + y, g2_ref[...], b2_ref[...]).astype(o_ref.dtype)


def _pick_q_tile(nq, q_tile):
    """Largest multiple-of-8 divisor of nq that is <= q_tile (else full nq)."""
    cands = [t for t in range(8, min(q_tile, nq) + 1, 8) if nq % t == 0]
    return max(cands) if cands else nq


def _vmem_limit_bytes():
    """~96 MiB on 128 MiB chips (v5e/v6e), ~48 MiB on 64 MiB chips (v7x)."""
    try:
        cap = pltpu.get_tpu_info().vmem_capacity_bytes
        return min(100 * 1024 * 1024, int(cap * 3 // 4))
    except Exception:  # pragma: no cover - conservative fallback
        return 48 * 1024 * 1024


def multi_head_attention(q, k, v, params, *,
                         compute_dtype=jnp.bfloat16,
                         out_dtype=jnp.float32,     # pass bf16 to halve HBM writeback
                         q_tile=256):               # 512 is good on v6e when Nq allows
    B, Nq, Dq = q.shape
    _, Nk, Dk = k.shape
    _, _, Dv = v.shape
    D = params["wq"].shape[1]
    H = NUM_HEADS
    assert D % H == 0, "out_dim must be divisible by num_heads"

    TQ = _pick_q_tile(Nq, q_tile)
    nq_tiles = Nq // TQ
    cdt = compute_dtype

    # NOTE: the PyTorch module scales logits by sqrt(out_dim), NOT sqrt(head_dim).
    # Fold it into W_k (free, host-side).  Not into W_q: the q projection also
    # feeds the residual and must stay unscaled.
    scale = 1.0 / math.sqrt(float(D))
    wq = params["wq"].astype(cdt)
    wk = (params["wk"] * scale).astype(cdt)
    wv = params["wv"].astype(cdt)
    wo = params["wo"].astype(cdt)

    const = lambda r, c: pl.BlockSpec((r, c), lambda b, qi: (0, 0))

    grid_spec = pltpu.PrefetchScalarGridSpec(
        num_scalar_prefetch=0,
        grid=(B, nq_tiles),
        in_specs=[
            # activations (leading batch dim squeezed out of the kernel refs)
            pl.BlockSpec((None, TQ, Dq), lambda b, qi: (b, qi, 0)),   # q tile
            pl.BlockSpec((None, Nk, Dk), lambda b, qi: (b, 0, 0)),    # k (resident across qi)
            pl.BlockSpec((None, Nk, Dv), lambda b, qi: (b, 0, 0)),    # v (resident across qi)
            # full-width weights (constant -> fetched once)
            const(Dq, D),    # wq
            const(Dk, D),    # wk (pre-scaled by 1/sqrt(out_dim))
            const(Dv, D),    # wv
            const(D, D),     # wo
            const(1, D),     # bo
            const(1, D),     # ln1 gamma
            const(1, D),     # ln1 beta
            const(1, D),     # ln2 gamma
            const(1, D),     # ln2 beta
        ],
        out_specs=pl.BlockSpec((None, TQ, D), lambda b, qi: (b, qi, 0)),
        scratch_shapes=[
            pltpu.VMEM((Nk, D), cdt),          # cached K projection (bf16)
            pltpu.VMEM((Nk, D), cdt),          # cached V projection (bf16)
            pltpu.VMEM((TQ, D), jnp.float32),  # lane-dense per-tile attention slab
        ],
    )

    return pl.pallas_call(
        mha_kernel,
        out_shape=jax.ShapeDtypeStruct((B, Nq, D), out_dtype),
        grid_spec=grid_spec,
        compiler_params=pltpu.CompilerParams(
            # b is "parallel" (megacore sharding); qi MUST be "arbitrary" so the
            # pl.when(qi == 0) K/V-projection cache is valid for later tiles.
            dimension_semantics=("parallel", "arbitrary"),
            vmem_limit_bytes=_vmem_limit_bytes(),
        ),
    )(q.astype(cdt), k.astype(cdt), v.astype(cdt),
      wq, wk, wv, wo, params["bo"],
      params["g1"], params["b1"], params["g2"], params["b2"])


def reference_forward(q, k, v, params, compute_dtype=jnp.float32):
    """Pure-JAX mirror of the PyTorch module.  `compute_dtype` optionally casts
    the matmul operands the same way the kernel does (f32 accumulation)."""
    H = NUM_HEADS
    cdt = compute_dtype
    f32 = jnp.float32
    wq, wk, wv, wo = (params[n].astype(cdt) for n in ("wq", "wk", "wv", "wo"))
    qp = jnp.dot(q.astype(cdt), wq, preferred_element_type=f32)
    kp = jnp.dot(k.astype(cdt), wk, preferred_element_type=f32)
    vp = jnp.dot(v.astype(cdt), wv, preferred_element_type=f32)
    B, Nq, D = qp.shape
    Nk = kp.shape[1]
    hd = D // H
    scale = 1.0 / math.sqrt(float(D))
    qh = (qp * scale).reshape(B, Nq, H, hd).transpose(0, 2, 1, 3).astype(cdt)
    kh = kp.reshape(B, Nk, H, hd).transpose(0, 2, 1, 3).astype(cdt)
    vh = vp.reshape(B, Nk, H, hd).transpose(0, 2, 1, 3).astype(cdt)
    logits = jnp.einsum("bhqd,bhkd->bhqk", qh, kh, preferred_element_type=f32)
    a = jax.nn.softmax(logits, axis=-1)
    attn = jnp.einsum("bhqk,bhkd->bhqd", a.astype(cdt), vh,
                      preferred_element_type=f32)
    attn = attn.transpose(0, 2, 1, 3).reshape(B, Nq, D)
    x = _layernorm(qp + attn, params["g1"], params["b1"])
    y = jnp.dot(x.astype(cdt), wo, preferred_element_type=f32) + params["bo"]
    y = jnp.maximum(y, 0.0)
    return _layernorm(x + y, params["g2"], params["b2"])


if __name__ == "__main__":
    # Small deterministic problem.  out_dim = 128 keeps the output / scratch
    # lane-dense (the representative case per the review); q_tile=8 gives two
    # query tiles so the K/V-projection cache reuse path is exercised.
    B, Nq, Nk = 2, 16, 8
    q_dim, k_dim, v_dim, out_dim = 16, 24, 20, 128   # out_dim % num_heads == 0

    key = jax.random.PRNGKey(0)
    ks = jax.random.split(key, 8)

    q = jax.random.normal(ks[0], (B, Nq, q_dim), jnp.float32)
    k = jax.random.normal(ks[1], (B, Nk, k_dim), jnp.float32)
    v = jax.random.normal(ks[2], (B, Nk, v_dim), jnp.float32)

    # Deterministic parameter init (weights stored as (in, out), i.e. W.T of torch).
    def init_w(kk, fan_in, fan_out):
        bound = 1.0 / math.sqrt(fan_in)
        return jax.random.uniform(kk, (fan_in, fan_out), jnp.float32, -bound, bound)

    params = {
        "wq": init_w(ks[3], q_dim, out_dim),
        "wk": init_w(ks[4], k_dim, out_dim),
        "wv": init_w(ks[5], v_dim, out_dim),
        "wo": init_w(ks[6], out_dim, out_dim),
        "bo": jax.random.uniform(ks[7], (1, out_dim), jnp.float32,
                                 -1.0 / math.sqrt(out_dim), 1.0 / math.sqrt(out_dim)),
        "g1": jnp.ones((1, out_dim), jnp.float32),
        "b1": jnp.zeros((1, out_dim), jnp.float32),
        "g2": jnp.ones((1, out_dim), jnp.float32),
        "b2": jnp.zeros((1, out_dim), jnp.float32),
    }

    out = multi_head_attention(q, k, v, params, q_tile=8)   # 2 query tiles / batch
    jax.block_until_ready(out)

    # Reference mirrors the kernel's bf16 matmul-operand casts (f32 accumulation)
    # so the check isolates structural errors from bf16 rounding; tolerance also
    # covers the approx EUP reciprocal and the host-side scale fold into W_k.
    ref = reference_forward(q, k, v, params, compute_dtype=jnp.bfloat16)
    assert out.shape == (B, Nq, out_dim)
    assert jnp.allclose(out, ref, atol=2.5e-2, rtol=2.5e-2), \
        f"mismatch vs pure-JAX reference (max abs diff {jnp.max(jnp.abs(out - ref))})"

    print("KERNEL_OK")
</pallas_src>

<mosaic_0001>
module attributes {stable_mosaic.version = 11 : i64} {
  func.func @mha_kernel(%arg0: i32, %arg1: i32, %arg2: memref<1x8x16xbf16, #tpu.memory_space<vmem>>, %arg3: memref<1x8x24xbf16, #tpu.memory_space<vmem>>, %arg4: memref<1x8x20xbf16, #tpu.memory_space<vmem>>, %arg5: memref<16x128xbf16, #tpu.memory_space<vmem>>, %arg6: memref<24x128xbf16, #tpu.memory_space<vmem>>, %arg7: memref<20x128xbf16, #tpu.memory_space<vmem>>, %arg8: memref<128x128xbf16, #tpu.memory_space<vmem>>, %arg9: memref<1x128xf32, #tpu.memory_space<vmem>>, %arg10: memref<1x128xf32, #tpu.memory_space<vmem>>, %arg11: memref<1x128xf32, #tpu.memory_space<vmem>>, %arg12: memref<1x128xf32, #tpu.memory_space<vmem>>, %arg13: memref<1x128xf32, #tpu.memory_space<vmem>>, %arg14: memref<1x8x128xf32, #tpu.memory_space<vmem>>, %arg15: memref<8x128xbf16, #tpu.memory_space<vmem>>, %arg16: memref<8x128xbf16, #tpu.memory_space<vmem>>, %arg17: memref<8x128xf32, #tpu.memory_space<vmem>>) attributes {dimension_semantics = [#tpu.dimension_semantics<parallel>, #tpu.dimension_semantics<arbitrary>], iteration_bounds = array<i64: 2, 2>, scalar_prefetch = 0 : i64, scratch_operands = 3 : i64, tpu.core_type = #tpu.core_type<tc>, window_params = [{transform_indices = @transform_0, window_bounds = array<i64: 1, 8, 16>}, {transform_indices = @transform_1, window_bounds = array<i64: 1, 8, 24>}, {transform_indices = @transform_2, window_bounds = array<i64: 1, 8, 20>}, {pipeline_mode = #tpu.pipeline_mode<synchronous>, transform_indices = @transform_3, window_bounds = array<i64: 16, 128>}, {pipeline_mode = #tpu.pipeline_mode<synchronous>, transform_indices = @transform_4, window_bounds = array<i64: 24, 128>}, {pipeline_mode = #tpu.pipeline_mode<synchronous>, transform_indices = @transform_5, window_bounds = array<i64: 20, 128>}, {pipeline_mode = #tpu.pipeline_mode<synchronous>, transform_indices = @transform_6, window_bounds = array<i64: 128, 128>}, {pipeline_mode = #tpu.pipeline_mode<synchronous>, transform_indices = @transform_7, window_bounds = array<i64: 1, 128>}, {pipeline_mode = #tpu.pipeline_mode<synchronous>, transform_indices = @transform_8, window_bounds = array<i64: 1, 128>}, {pipeline_mode = #tpu.pipeline_mode<synchronous>, transform_indices = @transform_9, window_bounds = array<i64: 1, 128>}, {pipeline_mode = #tpu.pipeline_mode<synchronous>, transform_indices = @transform_10, window_bounds = array<i64: 1, 128>}, {pipeline_mode = #tpu.pipeline_mode<synchronous>, transform_indices = @transform_11, window_bounds = array<i64: 1, 128>}, {transform_indices = @transform_12, window_bounds = array<i64: 1, 8, 128>}]} {
    %c0_i32 = arith.constant 0 : i32
    %0 = arith.cmpi eq, %arg1, %c0_i32 : i32
    %1 = arith.extui %0 : i1 to i32
    %c0_i32_0 = arith.constant 0 : i32
    %2 = arith.cmpi ne, %1, %c0_i32_0 : i32
    scf.if %2 {
      %c0_79 = arith.constant 0 : index
      %c0_80 = arith.constant 0 : index
      %c0_81 = arith.constant 0 : index
      %208 = vector.load %arg3[%c0_79, %c0_80, %c0_81] : memref<1x8x24xbf16, #tpu.memory_space<vmem>>, vector<1x8x24xbf16>
      %209 = vector.shape_cast %208 : vector<1x8x24xbf16> to vector<8x24xbf16>
      %c0_82 = arith.constant 0 : index
      %c0_83 = arith.constant 0 : index
      %210 = vector.load %arg6[%c0_82, %c0_83] : memref<24x128xbf16, #tpu.memory_space<vmem>>, vector<24x128xbf16>
      %cst_84 = arith.constant dense<0.000000e+00> : vector<8x128xf32>
      %211 = tpu.matmul %209, %210, %cst_84 {dimension_numbers = #tpu.dot_dimension_numbers<[1], [0], [0], [1], [0, 0, 1, 1], [], []>} : vector<8x24xbf16>, vector<24x128xbf16>, vector<8x128xf32> -> vector<8x128xf32>
      %212 = arith.truncf %211 : vector<8x128xf32> to vector<8x128xbf16>
      %c0_85 = arith.constant 0 : index
      %c0_86 = arith.constant 0 : index
      %213 = vector.load %arg15[%c0_85, %c0_86] : memref<8x128xbf16, #tpu.memory_space<vmem>>, vector<8x128xbf16>
      tpu.vector_store %arg15[%c0_85, %c0_86], %212 {strides = array<i32>} : memref<8x128xbf16, #tpu.memory_space<vmem>>, vector<8x128xbf16>,
      %c0_87 = arith.constant 0 : index
      %c0_88 = arith.constant 0 : index
      %c0_89 = arith.constant 0 : index
      %214 = vector.load %arg4[%c0_87, %c0_88, %c0_89] : memref<1x8x20xbf16, #tpu.memory_space<vmem>>, vector<1x8x20xbf16>
      %215 = vector.shape_cast %214 : vector<1x8x20xbf16> to vector<8x20xbf16>
      %c0_90 = arith.constant 0 : index
      %c0_91 = arith.constant 0 : index
      %216 = vector.load %arg7[%c0_90, %c0_91] : memref<20x128xbf16, #tpu.memory_space<vmem>>, vector<20x128xbf16>
      %cst_92 = arith.constant dense<0.000000e+00> : vector<8x128xf32>
      %217 = tpu.matmul %215, %216, %cst_92 {dimension_numbers = #tpu.dot_dimension_numbers<[1], [0], [0], [1], [0, 0, 1, 1], [], []>} : vector<8x20xbf16>, vector<20x128xbf16>, vector<8x128xf32> -> vector<8x128xf32>
      %218 = arith.truncf %217 : vector<8x128xf32> to vector<8x128xbf16>
      %c0_93 = arith.constant 0 : index
      %c0_94 = arith.constant 0 : index
      %219 = vector.load %arg16[%c0_93, %c0_94] : memref<8x128xbf16, #tpu.memory_space<vmem>>, vector<8x128xbf16>
      tpu.vector_store %arg16[%c0_93, %c0_94], %218 {strides = array<i32>} : memref<8x128xbf16, #tpu.memory_space<vmem>>, vector<8x128xbf16>,
    } else {
    }
    %c0 = arith.constant 0 : index
    %c0_1 = arith.constant 0 : index
    %c0_2 = arith.constant 0 : index
    %3 = vector.load %arg2[%c0, %c0_1, %c0_2] : memref<1x8x16xbf16, #tpu.memory_space<vmem>>, vector<1x8x16xbf16>
    %4 = vector.shape_cast %3 : vector<1x8x16xbf16> to vector<8x16xbf16>
    %c0_3 = arith.constant 0 : index
    %c0_4 = arith.constant 0 : index
    %5 = vector.load %arg5[%c0_3, %c0_4] : memref<16x128xbf16, #tpu.memory_space<vmem>>, vector<16x128xbf16>
    %cst = arith.constant dense<0.000000e+00> : vector<8x128xf32>
    %6 = tpu.matmul %4, %5, %cst {dimension_numbers = #tpu.dot_dimension_numbers<[1], [0], [0], [1], [0, 0, 1, 1], [], []>} : vector<8x16xbf16>, vector<16x128xbf16>, vector<8x128xf32> -> vector<8x128xf32>
    %7 = arith.truncf %6 : vector<8x128xf32> to vector<8x128xbf16>
    %c0_5 = arith.constant 0 : index
    %c0_6 = arith.constant 0 : index
    %8 = vector.load %arg15[%c0_5, %c0_6] : memref<8x128xbf16, #tpu.memory_space<vmem>>, vector<8x128xbf16>
    %c0_7 = arith.constant 0 : index
    %c0_8 = arith.constant 0 : index
    %9 = vector.load %arg16[%c0_7, %c0_8] : memref<8x128xbf16, #tpu.memory_space<vmem>>, vector<8x128xbf16>
    %10 = vector.extract_strided_slice %7 {offsets = [0, 0], sizes = [8, 16], strides = [1, 1]} : vector<8x128xbf16> to vector<8x16xbf16>
    %11 = vector.extract_strided_slice %8 {offsets = [0, 0], sizes = [8, 16], strides = [1, 1]} : vector<8x128xbf16> to vector<8x16xbf16>
    %cst_9 = arith.constant dense<0.000000e+00> : vector<8x8xf32>
    %12 = tpu.matmul %10, %11, %cst_9 {dimension_numbers = #tpu.dot_dimension_numbers<[1], [1], [0], [0], [0, 0, 1, 0], [], []>} : vector<8x16xbf16>, vector<8x16xbf16>, vector<8x8xf32> -> vector<8x8xf32>
    %cst_10 = arith.constant dense<0xFF800000> : vector<8xf32>
    %13 = vector.multi_reduction <maximumf>, %12, %cst_10 [1] : vector<8x8xf32> to vector<8xf32>
    %14 = vector.shape_cast %13 : vector<8xf32> to vector<8x1xf32>
    %15 = vector.broadcast %14 : vector<8x1xf32> to vector<8x8xf32>
    %16 = arith.subf %12, %15 : vector<8x8xf32>
    %17 = math.exp %16 : vector<8x8xf32>
    %cst_11 = arith.constant dense<0.000000e+00> : vector<8xf32>
    %18 = vector.multi_reduction <add>, %17, %cst_11 [1] : vector<8x8xf32> to vector<8xf32>
    %19 = vector.shape_cast %18 : vector<8xf32> to vector<8x1xf32>
    %20 = tpu.reciprocal %19 {approx = true} : vector<8x1xf32> -> vector<8x1xf32>
    %21 = vector.broadcast %20 : vector<8x1xf32> to vector<8x8xf32>
    %22 = arith.mulf %17, %21 : vector<8x8xf32>
    %23 = arith.truncf %22 : vector<8x8xf32> to vector<8x8xbf16>
    %24 = vector.extract_strided_slice %9 {offsets = [0, 0], sizes = [8, 16], strides = [1, 1]} : vector<8x128xbf16> to vector<8x16xbf16>
    %cst_12 = arith.constant dense<0.000000e+00> : vector<8x16xf32>
    %25 = tpu.matmul %23, %24, %cst_12 {dimension_numbers = #tpu.dot_dimension_numbers<[1], [0], [0], [1], [0, 0, 1, 1], [], []>} : vector<8x8xbf16>, vector<8x16xbf16>, vector<8x16xf32> -> vector<8x16xf32>
    %c0_13 = arith.constant 0 : index
    %c0_14 = arith.constant 0 : index
    %26 = vector.load %arg17[%c0_13, %c0_14] : memref<8x128xf32, #tpu.memory_space<vmem>>, vector<8x16xf32>
    tpu.vector_store %arg17[%c0_13, %c0_14], %25 {strides = array<i32>} : memref<8x128xf32, #tpu.memory_space<vmem>>, vector<8x16xf32>,
    %27 = vector.extract_strided_slice %7 {offsets = [0, 16], sizes = [8, 16], strides = [1, 1]} : vector<8x128xbf16> to vector<8x16xbf16>
    %28 = vector.extract_strided_slice %8 {offsets = [0, 16], sizes = [8, 16], strides = [1, 1]} : vector<8x128xbf16> to vector<8x16xbf16>
    %cst_15 = arith.constant dense<0.000000e+00> : vector<8x8xf32>
    %29 = tpu.matmul %27, %28, %cst_15 {dimension_numbers = #tpu.dot_dimension_numbers<[1], [1], [0], [0], [0, 0, 1, 0], [], []>} : vector<8x16xbf16>, vector<8x16xbf16>, vector<8x8xf32> -> vector<8x8xf32>
    %cst_16 = arith.constant dense<0xFF800000> : vector<8xf32>
    %30 = vector.multi_reduction <maximumf>, %29, %cst_16 [1] : vector<8x8xf32> to vector<8xf32>
    %31 = vector.shape_cast %30 : vector<8xf32> to vector<8x1xf32>
    %32 = vector.broadcast %31 : vector<8x1xf32> to vector<8x8xf32>
    %33 = arith.subf %29, %32 : vector<8x8xf32>
    %34 = math.exp %33 : vector<8x8xf32>
    %cst_17 = arith.constant dense<0.000000e+00> : vector<8xf32>
    %35 = vector.multi_reduction <add>, %34, %cst_17 [1] : vector<8x8xf32> to vector<8xf32>
    %36 = vector.shape_cast %35 : vector<8xf32> to vector<8x1xf32>
    %37 = tpu.reciprocal %36 {approx = true} : vector<8x1xf32> -> vector<8x1xf32>
    %38 = vector.broadcast %37 : vector<8x1xf32> to vector<8x8xf32>
    %39 = arith.mulf %34, %38 : vector<8x8xf32>
    %40 = arith.truncf %39 : vector<8x8xf32> to vector<8x8xbf16>
    %41 = vector.extract_strided_slice %9 {offsets = [0, 16], sizes = [8, 16], strides = [1, 1]} : vector<8x128xbf16> to vector<8x16xbf16>
    %cst_18 = arith.constant dense<0.000000e+00> : vector<8x16xf32>
    %42 = tpu.matmul %40, %41, %cst_18 {dimension_numbers = #tpu.dot_dimension_numbers<[1], [0], [0], [1], [0, 0, 1, 1], [], []>} : vector<8x8xbf16>, vector<8x16xbf16>, vector<8x16xf32> -> vector<8x16xf32>
    %c0_19 = arith.constant 0 : index
    %c16 = arith.constant 16 : index
    %43 = vector.load %arg17[%c0_19, %c16] : memref<8x128xf32, #tpu.memory_space<vmem>>, vector<8x16xf32>
    tpu.vector_store %arg17[%c0_19, %c16], %42 {strides = array<i32>} : memref<8x128xf32, #tpu.memory_space<vmem>>, vector<8x16xf32>,
    %44 = vector.extract_strided_slice %7 {offsets = [0, 32], sizes = [8, 16], strides = [1, 1]} : vector<8x128xbf16> to vector<8x16xbf16>
    %45 = vector.extract_strided_slice %8 {offsets = [0, 32], sizes = [8, 16], strides = [1, 1]} : vector<8x128xbf16> to vector<8x16xbf16>
    %cst_20 = arith.constant dense<0.000000e+00> : vector<8x8xf32>
    %46 = tpu.matmul %44, %45, %cst_20 {dimension_numbers = #tpu.dot_dimension_numbers<[1], [1], [0], [0], [0, 0, 1, 0], [], []>} : vector<8x16xbf16>, vector<8x16xbf16>, vector<8x8xf32> -> vector<8x8xf32>
    %cst_21 = arith.constant dense<0xFF800000> : vector<8xf32>
    %47 = vector.multi_reduction <maximumf>, %46, %cst_21 [1] : vector<8x8xf32> to vector<8xf32>
    %48 = vector.shape_cast %47 : vector<8xf32> to vector<8x1xf32>
    %49 = vector.broadcast %48 : vector<8x1xf32> to vector<8x8xf32>
    %50 = arith.subf %46, %49 : vector<8x8xf32>
    %51 = math.exp %50 : vector<8x8xf32>
    %cst_22 = arith.constant dense<0.000000e+00> : vector<8xf32>
    %52 = vector.multi_reduction <add>, %51, %cst_22 [1] : vector<8x8xf32> to vector<8xf32>
    %53 = vector.shape_cast %52 : vector<8xf32> to vector<8x1xf32>
    %54 = tpu.reciprocal %53 {approx = true} : vector<8x1xf32> -> vector<8x1xf32>
    %55 = vector.broadcast %54 : vector<8x1xf32> to vector<8x8xf32>
    %56 = arith.mulf %51, %55 : vector<8x8xf32>
    %57 = arith.truncf %56 : vector<8x8xf32> to vector<8x8xbf16>
    %58 = vector.extract_strided_slice %9 {offsets = [0, 32], sizes = [8, 16], strides = [1, 1]} : vector<8x128xbf16> to vector<8x16xbf16>
    %cst_23 = arith.constant dense<0.000000e+00> : vector<8x16xf32>
    %59 = tpu.matmul %57, %58, %cst_23 {dimension_numbers = #tpu.dot_dimension_numbers<[1], [0], [0], [1], [0, 0, 1, 1], [], []>} : vector<8x8xbf16>, vector<8x16xbf16>, vector<8x16xf32> -> vector<8x16xf32>
    %c0_24 = arith.constant 0 : index
    %c32 = arith.constant 32 : index
    %60 = vector.load %arg17[%c0_24, %c32] : memref<8x128xf32, #tpu.memory_space<vmem>>, vector<8x16xf32>
    tpu.vector_store %arg17[%c0_24, %c32], %59 {strides = array<i32>} : memref<8x128xf32, #tpu.memory_space<vmem>>, vector<8x16xf32>,
    %61 = vector.extract_strided_slice %7 {offsets = [0, 48], sizes = [8, 16], strides = [1, 1]} : vector<8x128xbf16> to vector<8x16xbf16>
    %62 = vector.extract_strided_slice %8 {offsets = [0, 48], sizes = [8, 16], strides = [1, 1]} : vector<8x128xbf16> to vector<8x16xbf16>
    %cst_25 = arith.constant dense<0.000000e+00> : vector<8x8xf32>
    %63 = tpu.matmul %61, %62, %cst_25 {dimension_numbers = #tpu.dot_dimension_numbers<[1], [1], [0], [0], [0, 0, 1, 0], [], []>} : vector<8x16xbf16>, vector<8x16xbf16>, vector<8x8xf32> -> vector<8x8xf32>
    %cst_26 = arith.constant dense<0xFF800000> : vector<8xf32>
    %64 = vector.multi_reduction <maximumf>, %63, %cst_26 [1] : vector<8x8xf32> to vector<8xf32>
    %65 = vector.shape_cast %64 : vector<8xf32> to vector<8x1xf32>
    %66 = vector.broadcast %65 : vector<8x1xf32> to vector<8x8xf32>
    %67 = arith.subf %63, %66 : vector<8x8xf32>
    %68 = math.exp %67 : vector<8x8xf32>
    %cst_27 = arith.constant dense<0.000000e+00> : vector<8xf32>
    %69 = vector.multi_reduction <add>, %68, %cst_27 [1] : vector<8x8xf32> to vector<8xf32>
    %70 = vector.shape_cast %69 : vector<8xf32> to vector<8x1xf32>
    %71 = tpu.reciprocal %70 {approx = true} : vector<8x1xf32> -> vector<8x1xf32>
    %72 = vector.broadcast %71 : vector<8x1xf32> to vector<8x8xf32>
    %73 = arith.mulf %68, %72 : vector<8x8xf32>
    %74 = arith.truncf %73 : vector<8x8xf32> to vector<8x8xbf16>
    %75 = vector.extract_strided_slice %9 {offsets = [0, 48], sizes = [8, 16], strides = [1, 1]} : vector<8x128xbf16> to vector<8x16xbf16>
    %cst_28 = arith.constant dense<0.000000e+00> : vector<8x16xf32>
    %76 = tpu.matmul %74, %75, %cst_28 {dimension_numbers = #tpu.dot_dimension_numbers<[1], [0], [0], [1], [0, 0, 1, 1], [], []>} : vector<8x8xbf16>, vector<8x16xbf16>, vector<8x16xf32> -> vector<8x16xf32>
    %c0_29 = arith.constant 0 : index
    %c48 = arith.constant 48 : index
    %77 = vector.load %arg17[%c0_29, %c48] : memref<8x128xf32, #tpu.memory_space<vmem>>, vector<8x16xf32>
    tpu.vector_store %arg17[%c0_29, %c48], %76 {strides = array<i32>} : memref<8x128xf32, #tpu.memory_space<vmem>>, vector<8x16xf32>,
    %78 = vector.extract_strided_slice %7 {offsets = [0, 64], sizes = [8, 16], strides = [1, 1]} : vector<8x128xbf16> to vector<8x16xbf16>
    %79 = vector.extract_strided_slice %8 {offsets = [0, 64], sizes = [8, 16], strides = [1, 1]} : vector<8x128xbf16> to vector<8x16xbf16>
    %cst_30 = arith.constant dense<0.000000e+00> : vector<8x8xf32>
    %80 = tpu.matmul %78, %79, %cst_30 {dimension_numbers = #tpu.dot_dimension_numbers<[1], [1], [0], [0], [0, 0, 1, 0], [], []>} : vector<8x16xbf16>, vector<8x16xbf16>, vector<8x8xf32> -> vector<8x8xf32>
    %cst_31 = arith.constant dense<0xFF800000> : vector<8xf32>
    %81 = vector.multi_reduction <maximumf>, %80, %cst_31 [1] : vector<8x8xf32> to vector<8xf32>
    %82 = vector.shape_cast %81 : vector<8xf32> to vector<8x1xf32>
    %83 = vector.broadcast %82 : vector<8x1xf32> to vector<8x8xf32>
    %84 = arith.subf %80, %83 : vector<8x8xf32>
    %85 = math.exp %84 : vector<8x8xf32>
    %cst_32 = arith.constant dense<0.000000e+00> : vector<8xf32>
    %86 = vector.multi_reduction <add>, %85, %cst_32 [1] : vector<8x8xf32> to vector<8xf32>
    %87 = vector.shape_cast %86 : vector<8xf32> to vector<8x1xf32>
    %88 = tpu.reciprocal %87 {approx = true} : vector<8x1xf32> -> vector<8x1xf32>
    %89 = vector.broadcast %88 : vector<8x1xf32> to vector<8x8xf32>
    %90 = arith.mulf %85, %89 : vector<8x8xf32>
    %91 = arith.truncf %90 : vector<8x8xf32> to vector<8x8xbf16>
    %92 = vector.extract_strided_slice %9 {offsets = [0, 64], sizes = [8, 16], strides = [1, 1]} : vector<8x128xbf16> to vector<8x16xbf16>
    %cst_33 = arith.constant dense<0.000000e+00> : vector<8x16xf32>
    %93 = tpu.matmul %91, %92, %cst_33 {dimension_numbers = #tpu.dot_dimension_numbers<[1], [0], [0], [1], [0, 0, 1, 1], [], []>} : vector<8x8xbf16>, vector<8x16xbf16>, vector<8x16xf32> -> vector<8x16xf32>
    %c0_34 = arith.constant 0 : index
    %c64 = arith.constant 64 : index
    %94 = vector.load %arg17[%c0_34, %c64] : memref<8x128xf32, #tpu.memory_space<vmem>>, vector<8x16xf32>
    tpu.vector_store %arg17[%c0_34, %c64], %93 {strides = array<i32>} : memref<8x128xf32, #tpu.memory_space<vmem>>, vector<8x16xf32>,
    %95 = vector.extract_strided_slice %7 {offsets = [0, 80], sizes = [8, 16], strides = [1, 1]} : vector<8x128xbf16> to vector<8x16xbf16>
    %96 = vector.extract_strided_slice %8 {offsets = [0, 80], sizes = [8, 16], strides = [1, 1]} : vector<8x128xbf16> to vector<8x16xbf16>
    %cst_35 = arith.constant dense<0.000000e+00> : vector<8x8xf32>
    %97 = tpu.matmul %95, %96, %cst_35 {dimension_numbers = #tpu.dot_dimension_numbers<[1], [1], [0], [0], [0, 0, 1, 0], [], []>} : vector<8x16xbf16>, vector<8x16xbf16>, vector<8x8xf32> -> vector<8x8xf32>
    %cst_36 = arith.constant dense<0xFF800000> : vector<8xf32>
    %98 = vector.multi_reduction <maximumf>, %97, %cst_36 [1] : vector<8x8xf32> to vector<8xf32>
    %99 = vector.shape_cast %98 : vector<8xf32> to vector<8x1xf32>
    %100 = vector.broadcast %99 : vector<8x1xf32> to vector<8x8xf32>
    %101 = arith.subf %97, %100 : vector<8x8xf32>
    %102 = math.exp %101 : vector<8x8xf32>
    %cst_37 = arith.constant dense<0.000000e+00> : vector<8xf32>
    %103 = vector.multi_reduction <add>, %102, %cst_37 [1] : vector<8x8xf32> to vector<8xf32>
    %104 = vector.shape_cast %103 : vector<8xf32> to vector<8x1xf32>
    %105 = tpu.reciprocal %104 {approx = true} : vector<8x1xf32> -> vector<8x1xf32>
    %106 = vector.broadcast %105 : vector<8x1xf32> to vector<8x8xf32>
    %107 = arith.mulf %102, %106 : vector<8x8xf32>
    %108 = arith.truncf %107 : vector<8x8xf32> to vector<8x8xbf16>
    %109 = vector.extract_strided_slice %9 {offsets = [0, 80], sizes = [8, 16], strides = [1, 1]} : vector<8x128xbf16> to vector<8x16xbf16>
    %cst_38 = arith.constant dense<0.000000e+00> : vector<8x16xf32>
    %110 = tpu.matmul %108, %109, %cst_38 {dimension_numbers = #tpu.dot_dimension_numbers<[1], [0], [0], [1], [0, 0, 1, 1], [], []>} : vector<8x8xbf16>, vector<8x16xbf16>, vector<8x16xf32> -> vector<8x16xf32>
    %c0_39 = arith.constant 0 : index
    %c80 = arith.constant 80 : index
    %111 = vector.load %arg17[%c0_39, %c80] : memref<8x128xf32, #tpu.memory_space<vmem>>, vector<8x16xf32>
    tpu.vector_store %arg17[%c0_39, %c80], %110 {strides = array<i32>} : memref<8x128xf32, #tpu.memory_space<vmem>>, vector<8x16xf32>,
    %112 = vector.extract_strided_slice %7 {offsets = [0, 96], sizes = [8, 16], strides = [1, 1]} : vector<8x128xbf16> to vector<8x16xbf16>
    %113 = vector.extract_strided_slice %8 {offsets = [0, 96], sizes = [8, 16], strides = [1, 1]} : vector<8x128xbf16> to vector<8x16xbf16>
    %cst_40 = arith.constant dense<0.000000e+00> : vector<8x8xf32>
    %114 = tpu.matmul %112, %113, %cst_40 {dimension_numbers = #tpu.dot_dimension_numbers<[1], [1], [0], [0], [0, 0, 1, 0], [], []>} : vector<8x16xbf16>, vector<8x16xbf16>, vector<8x8xf32> -> vector<8x8xf32>
    %cst_41 = arith.constant dense<0xFF800000> : vector<8xf32>
    %115 = vector.multi_reduction <maximumf>, %114, %cst_41 [1] : vector<8x8xf32> to vector<8xf32>
    %116 = vector.shape_cast %115 : vector<8xf32> to vector<8x1xf32>
    %117 = vector.broadcast %116 : vector<8x1xf32> to vector<8x8xf32>
    %118 = arith.subf %114, %117 : vector<8x8xf32>
    %119 = math.exp %118 : vector<8x8xf32>
    %cst_42 = arith.constant dense<0.000000e+00> : vector<8xf32>
    %120 = vector.multi_reduction <add>, %119, %cst_42 [1] : vector<8x8xf32> to vector<8xf32>
    %121 = vector.shape_cast %120 : vector<8xf32> to vector<8x1xf32>
    %122 = tpu.reciprocal %121 {approx = true} : vector<8x1xf32> -> vector<8x1xf32>
    %123 = vector.broadcast %122 : vector<8x1xf32> to vector<8x8xf32>
    %124 = arith.mulf %119, %123 : vector<8x8xf32>
    %125 = arith.truncf %124 : vector<8x8xf32> to vector<8x8xbf16>
    %126 = vector.extract_strided_slice %9 {offsets = [0, 96], sizes = [8, 16], strides = [1, 1]} : vector<8x128xbf16> to vector<8x16xbf16>
    %cst_43 = arith.constant dense<0.000000e+00> : vector<8x16xf32>
    %127 = tpu.matmul %125, %126, %cst_43 {dimension_numbers = #tpu.dot_dimension_numbers<[1], [0], [0], [1], [0, 0, 1, 1], [], []>} : vector<8x8xbf16>, vector<8x16xbf16>, vector<8x16xf32> -> vector<8x16xf32>
    %c0_44 = arith.constant 0 : index
    %c96 = arith.constant 96 : index
    %128 = vector.load %arg17[%c0_44, %c96] : memref<8x128xf32, #tpu.memory_space<vmem>>, vector<8x16xf32>
    tpu.vector_store %arg17[%c0_44, %c96], %127 {strides = array<i32>} : memref<8x128xf32, #tpu.memory_space<vmem>>, vector<8x16xf32>,
    %129 = vector.extract_strided_slice %7 {offsets = [0, 112], sizes = [8, 16], strides = [1, 1]} : vector<8x128xbf16> to vector<8x16xbf16>
    %130 = vector.extract_strided_slice %8 {offsets = [0, 112], sizes = [8, 16], strides = [1, 1]} : vector<8x128xbf16> to vector<8x16xbf16>
    %cst_45 = arith.constant dense<0.000000e+00> : vector<8x8xf32>
    %131 = tpu.matmul %129, %130, %cst_45 {dimension_numbers = #tpu.dot_dimension_numbers<[1], [1], [0], [0], [0, 0, 1, 0], [], []>} : vector<8x16xbf16>, vector<8x16xbf16>, vector<8x8xf32> -> vector<8x8xf32>
    %cst_46 = arith.constant dense<0xFF800000> : vector<8xf32>
    %132 = vector.multi_reduction <maximumf>, %131, %cst_46 [1] : vector<8x8xf32> to vector<8xf32>
    %133 = vector.shape_cast %132 : vector<8xf32> to vector<8x1xf32>
    %134 = vector.broadcast %133 : vector<8x1xf32> to vector<8x8xf32>
    %135 = arith.subf %131, %134 : vector<8x8xf32>
    %136 = math.exp %135 : vector<8x8xf32>
    %cst_47 = arith.constant dense<0.000000e+00> : vector<8xf32>
    %137 = vector.multi_reduction <add>, %136, %cst_47 [1] : vector<8x8xf32> to vector<8xf32>
    %138 = vector.shape_cast %137 : vector<8xf32> to vector<8x1xf32>
    %139 = tpu.reciprocal %138 {approx = true} : vector<8x1xf32> -> vector<8x1xf32>
    %140 = vector.broadcast %139 : vector<8x1xf32> to vector<8x8xf32>
    %141 = arith.mulf %136, %140 : vector<8x8xf32>
    %142 = arith.truncf %141 : vector<8x8xf32> to vector<8x8xbf16>
    %143 = vector.extract_strided_slice %9 {offsets = [0, 112], sizes = [8, 16], strides = [1, 1]} : vector<8x128xbf16> to vector<8x16xbf16>
    %cst_48 = arith.constant dense<0.000000e+00> : vector<8x16xf32>
    %144 = tpu.matmul %142, %143, %cst_48 {dimension_numbers = #tpu.dot_dimension_numbers<[1], [0], [0], [1], [0, 0, 1, 1], [], []>} : vector<8x8xbf16>, vector<8x16xbf16>, vector<8x16xf32> -> vector<8x16xf32>
    %c0_49 = arith.constant 0 : index
    %c112 = arith.constant 112 : index
    %145 = vector.load %arg17[%c0_49, %c112] : memref<8x128xf32, #tpu.memory_space<vmem>>, vector<8x16xf32>
    tpu.vector_store %arg17[%c0_49, %c112], %144 {strides = array<i32>} : memref<8x128xf32, #tpu.memory_space<vmem>>, vector<8x16xf32>,
    %c0_50 = arith.constant 0 : index
    %c0_51 = arith.constant 0 : index
    %146 = vector.load %arg17[%c0_50, %c0_51] : memref<8x128xf32, #tpu.memory_space<vmem>>, vector<8x128xf32>
    %147 = arith.addf %6, %146 : vector<8x128xf32>
    %c0_52 = arith.constant 0 : index
    %c0_53 = arith.constant 0 : index
    %148 = vector.load %arg10[%c0_52, %c0_53] : memref<1x128xf32, #tpu.memory_space<vmem>>, vector<1x128xf32>
    %c0_54 = arith.constant 0 : index
    %c0_55 = arith.constant 0 : index
    %149 = vector.load %arg11[%c0_54, %c0_55] : memref<1x128xf32, #tpu.memory_space<vmem>>, vector<1x128xf32>
    %cst_56 = arith.constant dense<0.000000e+00> : vector<8xf32>
    %150 = vector.multi_reduction <add>, %147, %cst_56 [1] : vector<8x128xf32> to vector<8xf32>
    %151 = vector.shape_cast %150 : vector<8xf32> to vector<8x1xf32>
    %cst_57 = arith.constant 1.280000e+02 : f32
    %152 = vector.broadcast %cst_57 : f32 to vector<8x1xf32>
    %153 = arith.divf %151, %152 : vector<8x1xf32>
    %154 = vector.broadcast %153 : vector<8x1xf32> to vector<8x128xf32>
    %155 = arith.subf %147, %154 : vector<8x128xf32>
    %156 = arith.mulf %155, %155 : vector<8x128xf32>
    %cst_58 = arith.constant dense<0.000000e+00> : vector<8xf32>
    %157 = vector.multi_reduction <add>, %156, %cst_58 [1] : vector<8x128xf32> to vector<8xf32>
    %158 = vector.shape_cast %157 : vector<8xf32> to vector<8x1xf32>
    %cst_59 = arith.constant 1.280000e+02 : f32
    %159 = vector.broadcast %cst_59 : f32 to vector<8x1xf32>
    %160 = arith.divf %158, %159 : vector<8x1xf32>
    %161 = vector.broadcast %153 : vector<8x1xf32> to vector<8x128xf32>
    %162 = arith.subf %147, %161 : vector<8x128xf32>
    %cst_60 = arith.constant 9.99999974E-6 : f32
    %163 = vector.broadcast %cst_60 : f32 to vector<8x1xf32>
    %164 = arith.addf %160, %163 : vector<8x1xf32>
    %165 = math.rsqrt %164 : vector<8x1xf32>
    %166 = vector.broadcast %165 : vector<8x1xf32> to vector<8x128xf32>
    %167 = arith.mulf %162, %166 : vector<8x128xf32>
    %168 = vector.broadcast %148 : vector<1x128xf32> to vector<8x128xf32>
    %169 = arith.mulf %167, %168 : vector<8x128xf32>
    %170 = vector.broadcast %149 : vector<1x128xf32> to vector<8x128xf32>
    %171 = arith.addf %169, %170 : vector<8x128xf32>
    %172 = arith.truncf %171 : vector<8x128xf32> to vector<8x128xbf16>
    %c0_61 = arith.constant 0 : index
    %c0_62 = arith.constant 0 : index
    %173 = vector.load %arg8[%c0_61, %c0_62] : memref<128x128xbf16, #tpu.memory_space<vmem>>, vector<128x128xbf16>
    %cst_63 = arith.constant dense<0.000000e+00> : vector<8x128xf32>
    %174 = tpu.matmul %172, %173, %cst_63 {dimension_numbers = #tpu.dot_dimension_numbers<[1], [0], [0], [1], [0, 0, 1, 1], [], []>} : vector<8x128xbf16>, vector<128x128xbf16>, vector<8x128xf32> -> vector<8x128xf32>
    %c0_64 = arith.constant 0 : index
    %c0_65 = arith.constant 0 : index
    %175 = vector.load %arg9[%c0_64, %c0_65] : memref<1x128xf32, #tpu.memory_space<vmem>>, vector<1x128xf32>
    %176 = vector.broadcast %175 : vector<1x128xf32> to vector<8x128xf32>
    %177 = arith.addf %174, %176 : vector<8x128xf32>
    %cst_66 = arith.constant 0.000000e+00 : f32
    %178 = vector.broadcast %cst_66 : f32 to vector<8x128xf32>
    %179 = arith.maximumf %177, %178 : vector<8x128xf32>
    %180 = arith.addf %171, %179 : vector<8x128xf32>
    %c0_67 = arith.constant 0 : index
    %c0_68 = arith.constant 0 : index
    %181 = vector.load %arg12[%c0_67, %c0_68] : memref<1x128xf32, #tpu.memory_space<vmem>>, vector<1x128xf32>
    %c0_69 = arith.constant 0 : index
    %c0_70 = arith.constant 0 : index
    %182 = vector.load %arg13[%c0_69, %c0_70] : memref<1x128xf32, #tpu.memory_space<vmem>>, vector<1x128xf32>
    %cst_71 = arith.constant dense<0.000000e+00> : vector<8xf32>
    %183 = vector.multi_reduction <add>, %180, %cst_71 [1] : vector<8x128xf32> to vector<8xf32>
    %184 = vector.shape_cast %183 : vector<8xf32> to vector<8x1xf32>
    %cst_72 = arith.constant 1.280000e+02 : f32
    %185 = vector.broadcast %cst_72 : f32 to vector<8x1xf32>
    %186 = arith.divf %184, %185 : vector<8x1xf32>
    %187 = vector.broadcast %186 : vector<8x1xf32> to vector<8x128xf32>
    %188 = arith.subf %180, %187 : vector<8x128xf32>
    %189 = arith.mulf %188, %188 : vector<8x128xf32>
    %cst_73 = arith.constant dense<0.000000e+00> : vector<8xf32>
    %190 = vector.multi_reduction <add>, %189, %cst_73 [1] : vector<8x128xf32> to vector<8xf32>
    %191 = vector.shape_cast %190 : vector<8xf32> to vector<8x1xf32>
    %cst_74 = arith.constant 1.280000e+02 : f32
    %192 = vector.broadcast %cst_74 : f32 to vector<8x1xf32>
    %193 = arith.divf %191, %192 : vector<8x1xf32>
    %194 = vector.broadcast %186 : vector<8x1xf32> to vector<8x128xf32>
    %195 = arith.subf %180, %194 : vector<8x128xf32>
    %cst_75 = arith.constant 9.99999974E-6 : f32
    %196 = vector.broadcast %cst_75 : f32 to vector<8x1xf32>
    %197 = arith.addf %193, %196 : vector<8x1xf32>
    %198 = math.rsqrt %197 : vector<8x1xf32>
    %199 = vector.broadcast %198 : vector<8x1xf32> to vector<8x128xf32>
    %200 = arith.mulf %195, %199 : vector<8x128xf32>
    %201 = vector.broadcast %181 : vector<1x128xf32> to vector<8x128xf32>
    %202 = arith.mulf %200, %201 : vector<8x128xf32>
    %203 = vector.broadcast %182 : vector<1x128xf32> to vector<8x128xf32>
    %204 = arith.addf %202, %203 : vector<8x128xf32>
    %c0_76 = arith.constant 0 : index
    %c0_77 = arith.constant 0 : index
    %c0_78 = arith.constant 0 : index
    %205 = vector.load %arg14[%c0_76, %c0_77, %c0_78] : memref<1x8x128xf32, #tpu.memory_space<vmem>>, vector<1x8x128xf32>
    %206 = vector.shape_cast %205 : vector<1x8x128xf32> to vector<8x128xf32>
    %207 = vector.shape_cast %204 : vector<8x128xf32> to vector<1x8x128xf32>
    tpu.vector_store %arg14[%c0_76, %c0_77, %c0_78], %207 {strides = array<i32>} : memref<1x8x128xf32, #tpu.memory_space<vmem>>, vector<1x8x128xf32>,
    return
  }
  func.func @transform_0(%arg0: i32, %arg1: i32) -> (i32, i32, i32) {
    %c0_i32 = arith.constant 0 : i32
    %c0_i32_0 = arith.constant 0 : i32
    return %arg0, %arg1, %c0_i32 : i32, i32, i32
  }
  func.func @transform_1(%arg0: i32, %arg1: i32) -> (i32, i32, i32) {
    %c0_i32 = arith.constant 0 : i32
    %c0_i32_0 = arith.constant 0 : i32
    %c0_i32_1 = arith.constant 0 : i32
    return %arg0, %c0_i32, %c0_i32_0 : i32, i32, i32
  }
  func.func @transform_2(%arg0: i32, %arg1: i32) -> (i32, i32, i32) {
    %c0_i32 = arith.constant 0 : i32
    %c0_i32_0 = arith.constant 0 : i32
    %c0_i32_1 = arith.constant 0 : i32
    return %arg0, %c0_i32, %c0_i32_0 : i32, i32, i32
  }
  func.func @transform_3(%arg0: i32, %arg1: i32) -> (i32, i32) {
    %c0_i32 = arith.constant 0 : i32
    %c0_i32_0 = arith.constant 0 : i32
    %c0_i32_1 = arith.constant 0 : i32
    return %c0_i32, %c0_i32_0 : i32, i32
  }
  func.func @transform_4(%arg0: i32, %arg1: i32) -> (i32, i32) {
    %c0_i32 = arith.constant 0 : i32
    %c0_i32_0 = arith.constant 0 : i32
    %c0_i32_1 = arith.constant 0 : i32
    return %c0_i32, %c0_i32_0 : i32, i32
  }
  func.func @transform_5(%arg0: i32, %arg1: i32) -> (i32, i32) {
    %c0_i32 = arith.constant 0 : i32
    %c0_i32_0 = arith.constant 0 : i32
    %c0_i32_1 = arith.constant 0 : i32
    return %c0_i32, %c0_i32_0 : i32, i32
  }
  func.func @transform_6(%arg0: i32, %arg1: i32) -> (i32, i32) {
    %c0_i32 = arith.constant 0 : i32
    %c0_i32_0 = arith.constant 0 : i32
    %c0_i32_1 = arith.constant 0 : i32
    return %c0_i32, %c0_i32_0 : i32, i32
  }
  func.func @transform_7(%arg0: i32, %arg1: i32) -> (i32, i32) {
    %c0_i32 = arith.constant 0 : i32
    %c0_i32_0 = arith.constant 0 : i32
    %c0_i32_1 = arith.constant 0 : i32
    return %c0_i32, %c0_i32_0 : i32, i32
  }
  func.func @transform_8(%arg0: i32, %arg1: i32) -> (i32, i32) {
    %c0_i32 = arith.constant 0 : i32
    %c0_i32_0 = arith.constant 0 : i32
    %c0_i32_1 = arith.constant 0 : i32
    return %c0_i32, %c0_i32_0 : i32, i32
  }
  func.func @transform_9(%arg0: i32, %arg1: i32) -> (i32, i32) {
    %c0_i32 = arith.constant 0 : i32
    %c0_i32_0 = arith.constant 0 : i32
    %c0_i32_1 = arith.constant 0 : i32
    return %c0_i32, %c0_i32_0 : i32, i32
  }
  func.func @transform_10(%arg0: i32, %arg1: i32) -> (i32, i32) {
    %c0_i32 = arith.constant 0 : i32
    %c0_i32_0 = arith.constant 0 : i32
    %c0_i32_1 = arith.constant 0 : i32
    return %c0_i32, %c0_i32_0 : i32, i32
  }
  func.func @transform_11(%arg0: i32, %arg1: i32) -> (i32, i32) {
    %c0_i32 = arith.constant 0 : i32
    %c0_i32_0 = arith.constant 0 : i32
    %c0_i32_1 = arith.constant 0 : i32
    return %c0_i32, %c0_i32_0 : i32, i32
  }
  func.func @transform_12(%arg0: i32, %arg1: i32) -> (i32, i32, i32) {
    %c0_i32 = arith.constant 0 : i32
    %c0_i32_0 = arith.constant 0 : i32
    return %arg0, %arg1, %c0_i32 : i32, i32, i32
  }
}

</mosaic_0001>

<llo_original>
// kernel: tpu_custom_call.1
$region0: #{tpu_custom_call.1}
  #allocation0 [shape = 'u32[]', space=smem, size = 0x4, offset = 0x4, fixed_abs, tag = 'smem constant byte address 0x4 - core index']
  #allocation1 [shape = 'u32[144,128]{1,0:T(1,128)}', space=vmem, size = 0x12000, scoped, tag = 'internal scratch']
  #allocation2 [shape = 'bf16[8,128]{1,0:T(8,128)(2,1)}', space=vmem, size = 0x800, scoped, tag = 'scratch operand']
  #allocation3 [shape = 'bf16[8,128]{1,0:T(8,128)(2,1)}', space=vmem, size = 0x800, scoped, tag = 'scratch operand']
  #allocation4 [shape = 'f32[8,128]{1,0:T(8,128)}', space=vmem, size = 0x1000, scoped, tag = 'scratch operand']
  %s0 = inlined_call_operand.hbm [shape: bf16[2,16,16], index: 0, kind: input, shape index: {}]
  %s1 = inlined_call_operand.hbm [shape: bf16[2,8,24], index: 1, kind: input, shape index: {}]
  %s2 = inlined_call_operand.hbm [shape: bf16[2,8,20], index: 2, kind: input, shape index: {}]
  %s3 = inlined_call_operand.hbm [shape: bf16[16,128], index: 3, kind: input, shape index: {}]
  %s4 = inlined_call_operand.vmem [shape: bf16[24,128], index: 4, kind: input, shape index: {}]
  %s5 = inlined_call_operand.hbm [shape: bf16[20,128], index: 5, kind: input, shape index: {}]
  %s6 = inlined_call_operand.hbm [shape: bf16[128,128], index: 6, kind: input, shape index: {}]
  %s7 = inlined_call_operand.vmem [shape: f32[1,128], index: 7, kind: input, shape index: {}]
  %s8 = inlined_call_operand.vmem [shape: f32[1,128], index: 8, kind: input, shape index: {}]
  %s9 = inlined_call_operand.vmem [shape: f32[1,128], index: 9, kind: input, shape index: {}]
  %s10 = inlined_call_operand.vmem [shape: f32[1,128], index: 10, kind: input, shape index: {}]
  %s11 = inlined_call_operand.vmem [shape: f32[1,128], index: 11, kind: input, shape index: {}]
  %s12 = inlined_call_operand.hbm [shape: f32[2,16,128], index: 12, kind: output, shape index: {}]
  %s13 = sld [smem:[#allocation0]]
  $region109: #{tpu_custom_call.1} parent=0
    _
  %s15 = ssub.s32 1, %s13
  %s16 = scalar_select 0, %s15, %s13
  $region1: #{tpu_custom_call.1} parent=0
    #allocation5 [shape = 'u8[4096]{0}', space=vmem, size = 0x1000, scoped, tag = 'input window, operand 0']
    #allocation6 [shape = 's32[2]{0}', space=sflag, size = 0x8, scoped, tag = 'scoped memory for tpu_custom_call.1']
    #allocation7 [shape = 's32[2]{0}', space=sflag, size = 0x8, scoped, tag = 'scoped memory for tpu_custom_call.1']
    #allocation8 [shape = 'u8[4096]{0}', space=vmem, size = 0x1000, scoped, tag = 'input window, operand 1']
    #allocation9 [shape = 's32[2]{0}', space=sflag, size = 0x8, scoped, tag = 'scoped memory for tpu_custom_call.1']
    #allocation10 [shape = 'u8[4096]{0}', space=vmem, size = 0x1000, scoped, tag = 'input window, operand 2']
    #allocation11 [shape = 'u8[4096]{0}', space=vmem, size = 0x1000, scoped, tag = 'input window, operand 3, single buffered']
    #allocation12 [shape = 's32[1]{0}', space=sflag, size = 0x4, scoped, tag = 'scoped memory for tpu_custom_call.1']
    #allocation13 [shape = 'u8[6144]{0}', space=vmem, size = 0x1800, scoped, tag = 'input window, operand 5, single buffered']
    #allocation14 [shape = 'u8[32768]{0}', space=vmem, size = 0x8000, scoped, tag = 'input window, operand 6, single buffered']
    #allocation15 [shape = 's32[1]{0}', space=sflag, size = 0x4, scoped, tag = 'scoped memory for tpu_custom_call.1']
    #allocation16 [shape = 'u8[8192]{0}', space=vmem, size = 0x2000, scoped, tag = 'output window, operand 0']
    %17 = vsyncpa [#allocation6], 0
    %s18 = scalar_lea.sflag [#allocation6], 1
    %19 = vsyncpa %s18, 0
    %20 = vsyncpa [#allocation9], 0
    %s21 = scalar_lea.sflag [#allocation9], 1
    %22 = vsyncpa %s21, 0
    %23 = vsyncpa [#allocation12], 0
    %24 = vsyncpa [#allocation15], 0
    %25 = vsyncpa [#allocation7], 0
    %s26 = scalar_lea.sflag [#allocation7], 1
    %27 = vsyncpa %s26, 0
    loop: start=0, step=1, limit=6
    $region2: #{tpu_custom_call.1} parent=1 // loop_pre_header
      _
    $region3: #{tpu_custom_call.1} parent=1 // loop_header
      %s29 = sphi 0, %s33
      %p30 = scmp.ge.s32.totalorder %s29, 6
      %s36 = sphi 0, %s48
      %s37 = sphi 0, %s44
      %s38 = sphi 0, %s36
      %s39 = sphi 0, %s37
      %s40 = sphi 0, %s38
      %s41 = sphi 0, %s39
      %s53 = sphi 0, %s55
      %s56 = sphi 0, %s53
      %s57 = sphi 0, %s56
      %s73 = sphi 0, %s57
      %s79 = sphi 0, %s81
      %s82 = sphi 0, %s79
      %s83 = sphi 0, %s82
      %s99 = sphi 0, %s83
      %s105 = sphi 0, %s107
      %s108 = sphi 0, %s105
      %s109 = sphi 0, %s108
      %s125 = sphi 0, %s109
      %s129 = sphi 0, %s129
      %s131 = sphi 0, %s129
      %s132 = sphi 0, %s131
      %s146 = sphi 0, %s132
      %s150 = sphi 0, %s150
      %s152 = sphi 0, %s150
      %s153 = sphi 0, %s152
      %s167 = sphi 0, %s153
      %s171 = sphi 0, %s171
      %s173 = sphi 0, %s171
      %s174 = sphi 0, %s173
      %s188 = sphi 0, %s174
      %s192 = sphi 0, %s192
      %s194 = sphi 0, %s192
      %s195 = sphi 0, %s194
      %s209 = sphi 0, %s195
      %s213 = sphi 0, %s213
      %s215 = sphi 0, %s213
      %s216 = sphi 0, %s215
      %s230 = sphi 0, %s216
      %s234 = sphi 0, %s234
      %s236 = sphi 0, %s234
      %s237 = sphi 0, %s236
      %s251 = sphi 0, %s237
      %s255 = sphi 0, %s255
      %s257 = sphi 0, %s255
      %s258 = sphi 0, %s257
      %s272 = sphi 0, %s258
      %s276 = sphi 0, %s276
      %s278 = sphi 0, %s276
      %s279 = sphi 0, %s278
      %s293 = sphi 0, %s279
      %s297 = sphi 0, %s297
      %s299 = sphi 0, %s297
      %s300 = sphi 0, %s299
      %s314 = sphi 0, %s300
      %s322 = sphi 0, %s324
      %s325 = sphi 0, %s322
      %s326 = sphi 0, %s325
      %s342 = sphi 0, %s326
    $region4: #{tpu_custom_call.1} parent=1 // loop_header_branch
      %32 = sbr.rel (%p30) target = $region8
    $region5: #{tpu_custom_call.1} parent=1 // loop_body
      %s34 = ssub.s32 %s29, 1
      %s35 = ssub.s32 %s29, 2
      %s42 = sadd.s32 1, %s37
      %p43 = scmp.ge.s32.totalorder %s42, 2
      %s44 = scalar_select %p43, 0, %s42
      %s45 = sadd.s32 1, %s36
      %s46 = scalar_select %p43, %s45, %s36
      %p47 = scmp.ge.s32.totalorder %s46, 2
      %s48 = scalar_select %p47, 0, %s46
      %s49 = ssub.s32 %s36, %s48
      %s50 = ssub.s32 %s37, %s44
      %s51 = sor.u32 %s49, %s50
      %p52 = scmp.eq.s32.totalorder %s51, 0
      %s54 = sadd.s32 %s53, 1
      %s55 = scalar_select %p52, %s53, %s54
      %p58 = pneg %p52
      %p59 = scmp.eq.s32.totalorder %s29, 3
      %p60 = por %p58, %p59
      %p61 = scmp.ne.s32.totalorder %s53, %s56
      %p62 = scmp.eq.s32.totalorder %s29, 0
      %p63 = por %p61, %p62
      %p64 = scmp.ne.s32.totalorder %s53, %s56
      %p65 = scmp.eq.s32.totalorder %s34, 3
      %p66 = por %p64, %p65
      %p67 = scmp.ne.s32.totalorder %s56, %s57
      %p68 = scmp.eq.s32.totalorder %s34, 0
      %p69 = por %p67, %p68
      %p70 = scmp.ne.s32.totalorder %s56, %s57
      %p71 = scmp.eq.s32.totalorder %s35, 3
      %p72 = por %p70, %p71
      %p74 = scmp.ne.s32.totalorder %s57, %s73
      %p75 = scmp.eq.s32.totalorder %s35, 0
      %p76 = por %p74, %p75
      %s77 = ssub.s32 %s36, %s48
      %p78 = scmp.eq.s32.totalorder %s77, 0
      %s80 = sadd.s32 %s79, 1
      %s81 = scalar_select %p78, %s79, %s80
      %p84 = pneg %p78
      %p85 = scmp.eq.s32.totalorder %s29, 3
      %p86 = por %p84, %p85
      %p87 = scmp.ne.s32.totalorder %s79, %s82
      %p88 = scmp.eq.s32.totalorder %s29, 0
      %p89 = por %p87, %p88
      %p90 = scmp.ne.s32.totalorder %s79, %s82
      %p91 = scmp.eq.s32.totalorder %s34, 3
      %p92 = por %p90, %p91
      %p93 = scmp.ne.s32.totalorder %s82, %s83
      %p94 = scmp.eq.s32.totalorder %s34, 0
      %p95 = por %p93, %p94
      %p96 = scmp.ne.s32.totalorder %s82, %s83
      %p97 = scmp.eq.s32.totalorder %s35, 3
      %p98 = por %p96, %p97
      %p100 = scmp.ne.s32.totalorder %s83, %s99
      %p101 = scmp.eq.s32.totalorder %s35, 0
      %p102 = por %p100, %p101
      %s103 = ssub.s32 %s36, %s48
      %p104 = scmp.eq.s32.totalorder %s103, 0
      %s106 = sadd.s32 %s105, 1
      %s107 = scalar_select %p104, %s105, %s106
      %p110 = pneg %p104
      %p111 = scmp.eq.s32.totalorder %s29, 3
      %p112 = por %p110, %p111
      %p113 = scmp.ne.s32.totalorder %s105, %s108
      %p114 = scmp.eq.s32.totalorder %s29, 0
      %p115 = por %p113, %p114
      %p116 = scmp.ne.s32.totalorder %s105, %s108
      %p117 = scmp.eq.s32.totalorder %s34, 3
      %p118 = por %p116, %p117
      %p119 = scmp.ne.s32.totalorder %s108, %s109
      %p120 = scmp.eq.s32.totalorder %s34, 0
      %p121 = por %p119, %p120
      %p122 = scmp.ne.s32.totalorder %s108, %s109
      %p123 = scmp.eq.s32.totalorder %s35, 3
      %p124 = por %p122, %p123
      %p126 = scmp.ne.s32.totalorder %s109, %s125
      %p127 = scmp.eq.s32.totalorder %s35, 0
      %p128 = por %p126, %p127
      %s130 = sadd.s32 %s129, 1
      %p133 = scmp.eq.s32.totalorder %s29, 3
      %p134 = scmp.ne.s32.totalorder %s129, %s131
      %p135 = scmp.eq.s32.totalorder %s29, 0
      %p136 = por %p134, %p135
      %p137 = scmp.ne.s32.totalorder %s129, %s131
      %p138 = scmp.eq.s32.totalorder %s34, 3
      %p139 = por %p137, %p138
      %p140 = scmp.ne.s32.totalorder %s131, %s132
      %p141 = scmp.eq.s32.totalorder %s34, 0
      %p142 = por %p140, %p141
      %p143 = scmp.ne.s32.totalorder %s131, %s132
      %p144 = scmp.eq.s32.totalorder %s35, 3
      %p145 = por %p143, %p144
      %p147 = scmp.ne.s32.totalorder %s132, %s146
      %p148 = scmp.eq.s32.totalorder %s35, 0
      %p149 = por %p147, %p148
      %s151 = sadd.s32 %s150, 1
      %p154 = scmp.eq.s32.totalorder %s29, 3
      %p155 = scmp.ne.s32.totalorder %s150, %s152
      %p156 = scmp.eq.s32.totalorder %s29, 0
      %p157 = por %p155, %p156
      %p158 = scmp.ne.s32.totalorder %s150, %s152
      %p159 = scmp.eq.s32.totalorder %s34, 3
      %p160 = por %p158, %p159
      %p161 = scmp.ne.s32.totalorder %s152, %s153
      %p162 = scmp.eq.s32.totalorder %s34, 0
      %p163 = por %p161, %p162
      %p164 = scmp.ne.s32.totalorder %s152, %s153
      %p165 = scmp.eq.s32.totalorder %s35, 3
      %p166 = por %p164, %p165
      %p168 = scmp.ne.s32.totalorder %s153, %s167
      %p169 = scmp.eq.s32.totalorder %s35, 0
      %p170 = por %p168, %p169
      %s172 = sadd.s32 %s171, 1
      %p175 = scmp.eq.s32.totalorder %s29, 3
      %p176 = scmp.ne.s32.totalorder %s171, %s173
      %p177 = scmp.eq.s32.totalorder %s29, 0
      %p178 = por %p176, %p177
      %p179 = scmp.ne.s32.totalorder %s171, %s173
      %p180 = scmp.eq.s32.totalorder %s34, 3
      %p181 = por %p179, %p180
      %p182 = scmp.ne.s32.totalorder %s173, %s174
      %p183 = scmp.eq.s32.totalorder %s34, 0
      %p184 = por %p182, %p183
      %p185 = scmp.ne.s32.totalorder %s173, %s174
      %p186 = scmp.eq.s32.totalorder %s35, 3
      %p187 = por %p185, %p186
      %p189 = scmp.ne.s32.totalorder %s174, %s188
      %p190 = scmp.eq.s32.totalorder %s35, 0
      %p191 = por %p189, %p190
      %s193 = sadd.s32 %s192, 1
      %p196 = scmp.eq.s32.totalorder %s29, 3
      %p197 = scmp.ne.s32.totalorder %s192, %s194
      %p198 = scmp.eq.s32.totalorder %s29, 0
      %p199 = por %p197, %p198
      %p200 = scmp.ne.s32.totalorder %s192, %s194
      %p201 = scmp.eq.s32.totalorder %s34, 3
      %p202 = por %p200, %p201
      %p203 = scmp.ne.s32.totalorder %s194, %s195
      %p204 = scmp.eq.s32.totalorder %s34, 0
      %p205 = por %p203, %p204
      %p206 = scmp.ne.s32.totalorder %s194, %s195
      %p207 = scmp.eq.s32.totalorder %s35, 3
      %p208 = por %p206, %p207
      %p210 = scmp.ne.s32.totalorder %s195, %s209
      %p211 = scmp.eq.s32.totalorder %s35, 0
      %p212 = por %p210, %p211
      %s214 = sadd.s32 %s213, 1
      %p217 = scmp.eq.s32.totalorder %s29, 3
      %p218 = scmp.ne.s32.totalorder %s213, %s215
      %p219 = scmp.eq.s32.totalorder %s29, 0
      %p220 = por %p218, %p219
      %p221 = scmp.ne.s32.totalorder %s213, %s215
      %p222 = scmp.eq.s32.totalorder %s34, 3
      %p223 = por %p221, %p222
      %p224 = scmp.ne.s32.totalorder %s215, %s216
      %p225 = scmp.eq.s32.totalorder %s34, 0
      %p226 = por %p224, %p225
      %p227 = scmp.ne.s32.totalorder %s215, %s216
      %p228 = scmp.eq.s32.totalorder %s35, 3
      %p229 = por %p227, %p228
      %p231 = scmp.ne.s32.totalorder %s216, %s230
      %p232 = scmp.eq.s32.totalorder %s35, 0
      %p233 = por %p231, %p232
      %s235 = sadd.s32 %s234, 1
      %p238 = scmp.eq.s32.totalorder %s29, 3
      %p239 = scmp.ne.s32.totalorder %s234, %s236
      %p240 = scmp.eq.s32.totalorder %s29, 0
      %p241 = por %p239, %p240
      %p242 = scmp.ne.s32.totalorder %s234, %s236
      %p243 = scmp.eq.s32.totalorder %s34, 3
      %p244 = por %p242, %p243
      %p245 = scmp.ne.s32.totalorder %s236, %s237
      %p246 = scmp.eq.s32.totalorder %s34, 0
      %p247 = por %p245, %p246
      %p248 = scmp.ne.s32.totalorder %s236, %s237
      %p249 = scmp.eq.s32.totalorder %s35, 3
      %p250 = por %p248, %p249
      %p252 = scmp.ne.s32.totalorder %s237, %s251
      %p253 = scmp.eq.s32.totalorder %s35, 0
      %p254 = por %p252, %p253
      %s256 = sadd.s32 %s255, 1
      %p259 = scmp.eq.s32.totalorder %s29, 3
      %p260 = scmp.ne.s32.totalorder %s255, %s257
      %p261 = scmp.eq.s32.totalorder %s29, 0
      %p262 = por %p260, %p261
      %p263 = scmp.ne.s32.totalorder %s255, %s257
      %p264 = scmp.eq.s32.totalorder %s34, 3
      %p265 = por %p263, %p264
      %p266 = scmp.ne.s32.totalorder %s257, %s258
      %p267 = scmp.eq.s32.totalorder %s34, 0
      %p268 = por %p266, %p267
      %p269 = scmp.ne.s32.totalorder %s257, %s258
      %p270 = scmp.eq.s32.totalorder %s35, 3
      %p271 = por %p269, %p270
      %p273 = scmp.ne.s32.totalorder %s258, %s272
      %p274 = scmp.eq.s32.totalorder %s35, 0
      %p275 = por %p273, %p274
      %s277 = sadd.s32 %s276, 1
      %p280 = scmp.eq.s32.totalorder %s29, 3
      %p281 = scmp.ne.s32.totalorder %s276, %s278
      %p282 = scmp.eq.s32.totalorder %s29, 0
      %p283 = por %p281, %p282
      %p284 = scmp.ne.s32.totalorder %s276, %s278
      %p285 = scmp.eq.s32.totalorder %s34, 3
      %p286 = por %p284, %p285
      %p287 = scmp.ne.s32.totalorder %s278, %s279
      %p288 = scmp.eq.s32.totalorder %s34, 0
      %p289 = por %p287, %p288
      %p290 = scmp.ne.s32.totalorder %s278, %s279
      %p291 = scmp.eq.s32.totalorder %s35, 3
      %p292 = por %p290, %p291
      %p294 = scmp.ne.s32.totalorder %s279, %s293
      %p295 = scmp.eq.s32.totalorder %s35, 0
      %p296 = por %p294, %p295
      %s298 = sadd.s32 %s297, 1
      %p301 = scmp.eq.s32.totalorder %s29, 3
      %p302 = scmp.ne.s32.totalorder %s297, %s299
      %p303 = scmp.eq.s32.totalorder %s29, 0
      %p304 = por %p302, %p303
      %p305 = scmp.ne.s32.totalorder %s297, %s299
      %p306 = scmp.eq.s32.totalorder %s34, 3
      %p307 = por %p305, %p306
      %p308 = scmp.ne.s32.totalorder %s299, %s300
      %p309 = scmp.eq.s32.totalorder %s34, 0
      %p310 = por %p308, %p309
      %p311 = scmp.ne.s32.totalorder %s299, %s300
      %p312 = scmp.eq.s32.totalorder %s35, 3
      %p313 = por %p311, %p312
      %p315 = scmp.ne.s32.totalorder %s300, %s314
      %p316 = scmp.eq.s32.totalorder %s35, 0
      %p317 = por %p315, %p316
      %s318 = ssub.s32 %s36, %s48
      %s319 = ssub.s32 %s37, %s44
      %s320 = sor.u32 %s318, %s319
      %p321 = scmp.eq.s32.totalorder %s320, 0
      %s323 = sadd.s32 %s322, 1
      %s324 = scalar_select %p321, %s322, %s323
      %p327 = pneg %p321
      %p328 = scmp.eq.s32.totalorder %s29, 3
      %p329 = por %p327, %p328
      %p330 = scmp.ne.s32.totalorder %s322, %s325
      %p331 = scmp.eq.s32.totalorder %s29, 0
      %p332 = por %p330, %p331
      %p333 = scmp.ne.s32.totalorder %s322, %s325
      %p334 = scmp.eq.s32.totalorder %s34, 3
      %p335 = por %p333, %p334
      %p336 = scmp.ne.s32.totalorder %s325, %s326
      %p337 = scmp.eq.s32.totalorder %s34, 0
      %p338 = por %p336, %p337
      %p339 = scmp.ne.s32.totalorder %s325, %s326
      %p340 = scmp.eq.s32.totalorder %s35, 3
      %p341 = por %p339, %p340
      %p343 = scmp.ne.s32.totalorder %s326, %s342
      %p344 = scmp.eq.s32.totalorder %s35, 0
      %p345 = por %p343, %p344
      %p346 = scmp.le.s32.totalorder 1, %s29
      %p347 = scmp.lt.s32.totalorder %s29, 5
      %p348 = pnand %p346, %p347
      %p349 = pneg %p348
      // Predicated region
      $region9: #{tpu_custom_call.1} parent=5 // pred_check
        _
      $region10: #{tpu_custom_call.1} parent=5 // pred_check_branch
        %351 = sbr.rel (%p348) target = $region12
      $region11: #{tpu_custom_call.1} parent=5 // pred_region
        %s352 = ssub.s32 %s29, 1
        // Predicated region
        $region13: #{tpu_custom_call.1} parent=11 // pred_check
          %p353 = pneg %p142
        $region14: #{tpu_custom_call.1} parent=11 // pred_check_branch
          %355 = sbr.rel (%p353) target = $region16
        $region15: #{tpu_custom_call.1} parent=11 // pred_region
          %s357 = ssub.s32 128, 128
          %358 = vsyncadd [#allocation12], %s357
          %s359 = sshll.u32 [#allocation11], 4
          %s360 = int_to_ptr.vmem [resolvable:$true] %s359
          %365 = dma.hbm_to_vmem [thread:$0]  %s3, 128, %s360, [#allocation12], 64, 64, 4
        $region16: #{tpu_custom_call.1} parent=11 // pred_fallthru
          _
        // Predicated region
        $region17: #{tpu_custom_call.1} parent=11 // pred_check
          %p366 = pneg %p163
        $region18: #{tpu_custom_call.1} parent=11 // pred_check_branch
          %368 = sbr.rel (%p366) target = $region20
        $region19: #{tpu_custom_call.1} parent=11 // pred_region
          _
        $region20: #{tpu_custom_call.1} parent=11 // pred_fallthru
          _
        // Predicated region
        $region21: #{tpu_custom_call.1} parent=11 // pred_check
          %p369 = pneg %p184
        $region22: #{tpu_custom_call.1} parent=11 // pred_check_branch
          %371 = sbr.rel (%p369) target = $region24
        $region23: #{tpu_custom_call.1} parent=11 // pred_region
          %s373 = ssub.s32 192, 192
          %374 = vsyncadd [#allocation12], %s373
          %s375 = sshll.u32 [#allocation13], 4
          %s376 = int_to_ptr.vmem [resolvable:$true] %s375
          %381 = dma.hbm_to_vmem [thread:$0]  %s5, 192, %s376, [#allocation12], 64, 64, 4
        $region24: #{tpu_custom_call.1} parent=11 // pred_fallthru
          _
        // Predicated region
        $region25: #{tpu_custom_call.1} parent=11 // pred_check
          %p382 = pneg %p205
        $region26: #{tpu_custom_call.1} parent=11 // pred_check_branch
          %384 = sbr.rel (%p382) target = $region28
        $region27: #{tpu_custom_call.1} parent=11 // pred_region
          %s386 = ssub.s32 1024, 1024
          %387 = vsyncadd [#allocation15], %s386
          %s388 = sshll.u32 [#allocation14], 4
          %s389 = int_to_ptr.vmem [resolvable:$true] %s388
          %394 = dma.hbm_to_vmem [thread:$0]  %s6, 1024, %s389, [#allocation15], 64, 64, 4
        $region28: #{tpu_custom_call.1} parent=11 // pred_fallthru
          _
        // Predicated region
        $region29: #{tpu_custom_call.1} parent=11 // pred_check
          %p395 = pneg %p226
        $region30: #{tpu_custom_call.1} parent=11 // pred_check_branch
          %397 = sbr.rel (%p395) target = $region32
        $region31: #{tpu_custom_call.1} parent=11 // pred_region
          _
        $region32: #{tpu_custom_call.1} parent=11 // pred_fallthru
          _
        // Predicated region
        $region33: #{tpu_custom_call.1} parent=11 // pred_check
          %p398 = pneg %p247
        $region34: #{tpu_custom_call.1} parent=11 // pred_check_branch
          %400 = sbr.rel (%p398) target = $region36
        $region35: #{tpu_custom_call.1} parent=11 // pred_region
          _
        $region36: #{tpu_custom_call.1} parent=11 // pred_fallthru
          _
        // Predicated region
        $region37: #{tpu_custom_call.1} parent=11 // pred_check
          %p401 = pneg %p268
        $region38: #{tpu_custom_call.1} parent=11 // pred_check_branch
          %403 = sbr.rel (%p401) target = $region40
        $region39: #{tpu_custom_call.1} parent=11 // pred_region
          _
        $region40: #{tpu_custom_call.1} parent=11 // pred_fallthru
          _
        // Predicated region
        $region41: #{tpu_custom_call.1} parent=11 // pred_check
          %p404 = pneg %p289
        $region42: #{tpu_custom_call.1} parent=11 // pred_check_branch
          %406 = sbr.rel (%p404) target = $region44
        $region43: #{tpu_custom_call.1} parent=11 // pred_region
          _
        $region44: #{tpu_custom_call.1} parent=11 // pred_fallthru
          _
        // Predicated region
        $region45: #{tpu_custom_call.1} parent=11 // pred_check
          %p407 = pneg %p310
        $region46: #{tpu_custom_call.1} parent=11 // pred_check_branch
          %409 = sbr.rel (%p407) target = $region48
        $region47: #{tpu_custom_call.1} parent=11 // pred_region
          _
        $region48: #{tpu_custom_call.1} parent=11 // pred_fallthru
          _
      $region12: #{tpu_custom_call.1} parent=5 // pred_fallthru
        _
      %p410 = scmp.lt.s32.totalorder %s29, 4
      // Predicated region
      $region49: #{tpu_custom_call.1} parent=5 // pred_check
        %p411 = pneg %p410
      $region50: #{tpu_custom_call.1} parent=5 // pred_check_branch
        %413 = sbr.rel (%p411) target = $region52
      $region51: #{tpu_custom_call.1} parent=5 // pred_region
        // Predicated region
        $region53: #{tpu_custom_call.1} parent=51 // pred_check
          %p414 = pneg %p63
        $region54: #{tpu_custom_call.1} parent=51 // pred_check_branch
          %416 = sbr.rel (%p414) target = $region56
        $region55: #{tpu_custom_call.1} parent=51 // pred_region
          %s417 = sand.u32 %s53, 1
          %s418 = scalar_lea.sflag [#allocation6], %s417
          %s419 = sand.u32 %s53, 1
          %s420 = smul.addr %s419, 4
          %s421 = scalar_lea.vmem [#allocation5], %s420
          %s423 = ssub.s32 64, 64
          %424 = vsyncadd %s418, %s423
          %s425 = smul.addr %s36, 2
          %s426 = sadd.s32 %s37, %s425
          %s427 = smul.addr %s426, 64
          %s428 = scalar_lea.hbm %s0, %s427
          %s430 = sshll.u32 %s421, 4
          %s431 = int_to_ptr.vmem [resolvable:$true] %s430
          %433 = dma.hbm_to_vmem [thread:$0]  %s428, 64, %s431, %s418
        $region56: #{tpu_custom_call.1} parent=51 // pred_fallthru
          _
        // Predicated region
        $region57: #{tpu_custom_call.1} parent=51 // pred_check
          %p434 = pneg %p89
        $region58: #{tpu_custom_call.1} parent=51 // pred_check_branch
          %436 = sbr.rel (%p434) target = $region60
        $region59: #{tpu_custom_call.1} parent=51 // pred_region
          %s437 = sand.u32 %s29, 1
          %s438 = scalar_lea.sflag [#allocation9], %s437
          %s439 = sand.u32 %s79, 1
          %s440 = smul.addr %s439, 4
          %s441 = scalar_lea.vmem [#allocation8], %s440
          %s443 = ssub.s32 64, 64
          %444 = vsyncadd %s438, %s443
          %s445 = smul.addr %s36, 64
          %s446 = scalar_lea.hbm %s1, %s445
          %s448 = sshll.u32 %s441, 4
          %s449 = int_to_ptr.vmem [resolvable:$true] %s448
          %451 = dma.hbm_to_vmem [thread:$0]  %s446, 64, %s449, %s438
        $region60: #{tpu_custom_call.1} parent=51 // pred_fallthru
          _
        // Predicated region
        $region61: #{tpu_custom_call.1} parent=51 // pred_check
          %p452 = pneg %p115
        $region62: #{tpu_custom_call.1} parent=51 // pred_check_branch
          %454 = sbr.rel (%p452) target = $region64
        $region63: #{tpu_custom_call.1} parent=51 // pred_region
          %s455 = sand.u32 %s29, 1
          %s456 = scalar_lea.sflag [#allocation9], %s455
          %s457 = sand.u32 %s105, 1
          %s458 = smul.addr %s457, 4
          %s459 = scalar_lea.vmem [#allocation10], %s458
          %s461 = ssub.s32 64, 64
          %462 = vsyncadd %s456, %s461
          %s463 = smul.addr %s36, 64
          %s464 = scalar_lea.hbm %s2, %s463
          %s466 = sshll.u32 %s459, 4
          %s467 = int_to_ptr.vmem [resolvable:$true] %s466
          %469 = dma.hbm_to_vmem [thread:$0]  %s464, 64, %s467, %s456
        $region64: #{tpu_custom_call.1} parent=51 // pred_fallthru
          _
      $region52: #{tpu_custom_call.1} parent=5 // pred_fallthru
        _
      %p470 = scmp.le.s32.totalorder 1, %s29
      %p471 = scmp.lt.s32.totalorder %s29, 5
      %p472 = pnand %p470, %p471
      %p473 = pneg %p472
      // Predicated region
      $region65: #{tpu_custom_call.1} parent=5 // pred_check
        _
      $region66: #{tpu_custom_call.1} parent=5 // pred_check_branch
        %475 = sbr.rel (%p472) target = $region68
      $region67: #{tpu_custom_call.1} parent=5 // pred_region
        %s476 = ssub.s32 %s29, 1
        %s477 = sand.u32 %s56, 1
        %s478 = scalar_lea.sflag [#allocation6], %s477
        %s479 = sand.u32 %s56, 1
        %s480 = smul.addr %s479, 4
        %s481 = scalar_lea.vmem [#allocation5], %s480
        // Predicated region
        $region69: #{tpu_custom_call.1} parent=67 // pred_check
          %p482 = pneg %p69
        $region70: #{tpu_custom_call.1} parent=67 // pred_check_branch
          %484 = sbr.rel (%p482) target = $region72
        $region71: #{tpu_custom_call.1} parent=67 // pred_region
          %485 = dma.done %s478, 64
        $region72: #{tpu_custom_call.1} parent=67 // pred_fallthru
          _
        %s486 = sand.u32 %s34, 1
        %s487 = scalar_lea.sflag [#allocation9], %s486
        %s488 = sand.u32 %s82, 1
        %s489 = smul.addr %s488, 4
        %s490 = scalar_lea.vmem [#allocation8], %s489
        // Predicated region
        $region73: #{tpu_custom_call.1} parent=67 // pred_check
          %p491 = pneg %p95
        $region74: #{tpu_custom_call.1} parent=67 // pred_check_branch
          %493 = sbr.rel (%p491) target = $region76
        $region75: #{tpu_custom_call.1} parent=67 // pred_region
          %494 = dma.done %s487, 64
        $region76: #{tpu_custom_call.1} parent=67 // pred_fallthru
          _
        %s495 = sand.u32 %s34, 1
        %s496 = scalar_lea.sflag [#allocation9], %s495
        %s497 = sand.u32 %s108, 1
        %s498 = smul.addr %s497, 4
        %s499 = scalar_lea.vmem [#allocation10], %s498
        // Predicated region
        $region77: #{tpu_custom_call.1} parent=67 // pred_check
          %p500 = pneg %p121
        $region78: #{tpu_custom_call.1} parent=67 // pred_check_branch
          %502 = sbr.rel (%p500) target = $region80
        $region79: #{tpu_custom_call.1} parent=67 // pred_region
          %503 = dma.done %s496, 64
        $region80: #{tpu_custom_call.1} parent=67 // pred_fallthru
          _
        // Predicated region
        $region81: #{tpu_custom_call.1} parent=67 // pred_check
          %p504 = pneg %p142
        $region82: #{tpu_custom_call.1} parent=67 // pred_check_branch
          %506 = sbr.rel (%p504) target = $region84
        $region83: #{tpu_custom_call.1} parent=67 // pred_region
          %507 = dma.done [#allocation12], 128
        $region84: #{tpu_custom_call.1} parent=67 // pred_fallthru
          _
        // Predicated region
        $region85: #{tpu_custom_call.1} parent=67 // pred_check
          %p508 = pneg %p184
        $region86: #{tpu_custom_call.1} parent=67 // pred_check_branch
          %510 = sbr.rel (%p508) target = $region88
        $region87: #{tpu_custom_call.1} parent=67 // pred_region
          %511 = dma.done [#allocation12], 192
        $region88: #{tpu_custom_call.1} parent=67 // pred_fallthru
          _
        // Predicated region
        $region89: #{tpu_custom_call.1} parent=67 // pred_check
          %p512 = pneg %p205
        $region90: #{tpu_custom_call.1} parent=67 // pred_check_branch
          %514 = sbr.rel (%p512) target = $region92
        $region91: #{tpu_custom_call.1} parent=67 // pred_region
          %515 = dma.done [#allocation15], 1024
        $region92: #{tpu_custom_call.1} parent=67 // pred_fallthru
          _
        %s516 = sand.u32 %s56, 1
        %s517 = scalar_lea.sflag [#allocation6], %s516
        %s518 = sand.u32 %s56, 1
        %s519 = smul.addr %s518, 4
        %s520 = scalar_lea.vmem [#allocation5], %s519
        %p521 = pneg %p69
        %p522 = pneg %p66
        %s523 = sand.u32 %s34, 1
        %s524 = scalar_lea.sflag [#allocation9], %s523
        %s525 = sand.u32 %s82, 1
        %s526 = smul.addr %s525, 4
        %s527 = scalar_lea.vmem [#allocation8], %s526
        %p528 = pneg %p95
        %p529 = pneg %p92
        %s530 = sand.u32 %s34, 1
        %s531 = scalar_lea.sflag [#allocation9], %s530
        %s532 = sand.u32 %s108, 1
        %s533 = smul.addr %s532, 4
        %s534 = scalar_lea.vmem [#allocation10], %s533
        %p535 = pneg %p121
        %p536 = pneg %p118
        %p537 = pneg %p142
        %p538 = pneg %p139
        %p539 = pneg %p163
        %p540 = pneg %p160
        %p541 = pneg %p184
        %p542 = pneg %p181
        %p543 = pneg %p205
        %p544 = pneg %p202
        %p545 = pneg %p226
        %p546 = pneg %p223
        %p547 = pneg %p247
        %p548 = pneg %p244
        %p549 = pneg %p268
        %p550 = pneg %p265
        %p551 = pneg %p289
        %p552 = pneg %p286
        %p553 = pneg %p310
        %p554 = pneg %p307
        %p555 = pneg %p338
        %p556 = pneg %p335
        %s557 = sand.u32 %s325, 1
        %s558 = scalar_lea.sflag [#allocation7], %s557
        %s559 = sand.u32 %s325, 1
        %s560 = smul.addr %s559, 8
        %s561 = scalar_lea.vmem [#allocation16], %s560
        %p563 = scmp.eq.s32.totalorder %s39, 0
        // Predicated region
        $region93: #{tpu_custom_call.1} parent=67 // pred_check
          %p564 = pneg %p563
        $region94: #{tpu_custom_call.1} parent=67 // pred_check_branch
          %566 = sbr.rel (%p564) target = $region96
        $region95: #{tpu_custom_call.1} parent=67 // pred_region
          %v567 = vld [vmem:[%s490] sm:$0xf]
          %v568 = vld [vmem:[%s4] sm:$0xf]
          %v569 = vld [vmem:[%s4 + $0x4] sm:$0xf]
          %v570 = vld [vmem:[%s4 + $0x8] sm:$0xf]
          %v574 = vunpack.c.l.b16 %v568
          %v575 = vunpack.c.l.b16 %v569
          %v576 = vunpack.c.l.b16 %v570
          %v577 = vpack.c.b16 %v575, %v574
          %v578 = vpack.c.b16 %v576, %v576
          %vm580 = vcmask 195584
          %v582 = vsel %vm580, %v567, 0
          %vm584 = vcmask 1043456
          %v586 = vsel %vm584, %v578, 0
          %588 = vmatprep.subr.bf16.mxu0 0
          %589 = vmatpush1.bf16.msra.mxu0 %v577
          %590 = vmatprep.subr.bf16.mxu0 0
          %591 = vmatpush1.bf16.msra.mxu0 %v586
          %592 = vmatprep.subr.bf16.mxu0 0
          %593 = vmatpush1.bf16.msra.mxu0 0
          %594 = vmatprep.subr.bf16.mxu0 0
          %595 = vmatpush1.bf16.msra.mxu0 0
          %596 = vmatprep.subr.bf16.mxu0 0
          %597 = vmatpush1.bf16.msra.mxu0 0
          %598 = vmatprep.subr.bf16.mxu0 0
          %599 = vmatpush1.bf16.msra.mxu0 0
          %600 = vmatprep.subr.bf16.mxu0 0
          %601 = vmatpush1.bf16.msra.mxu0 0
          %602 = vmatprep.subr.bf16.mxu0 0
          %603 = vmatpush1.bf16.msra.mxu0 0
          %604 = vmatprep.subr.bf16.mxu0 0
          %605 = vmatpush1.bf16.msra.mxu0 0
          %606 = vmatprep.subr.bf16.mxu0 0
          %607 = vmatpush1.bf16.msra.mxu0 0
          %608 = vmatprep.subr.bf16.mxu0 0
          %609 = vmatpush1.bf16.msra.mxu0 0
          %610 = vmatprep.subr.bf16.mxu0 0
          %611 = vmatpush1.bf16.msra.mxu0 0
          %612 = vmatprep.subr.bf16.mxu0 0
          %613 = vmatpush1.bf16.msra.mxu0 0
          %614 = vmatprep.subr.bf16.mxu0 0
          %615 = vmatpush1.bf16.msra.mxu0 0
          %616 = vmatprep.subr.bf16.mxu0 0
          %617 = vmatpush1.bf16.msra.mxu0 0
          %618 = vmatprep.subr.bf16.mxu0 0
          %619 = vmatpush1.bf16.msra.mxu0 0
          %620 = vmatprep.mubr.bf16.mxu0 0
          %621 = vmatmul.mubr.bf16.gmra.mrb[0].mxu0 %v582
          %v622 = vpop.f32.mrb[0].mxu0
          %v623 = vadd.f32 0.0, %v622
          %v624 = vpop.f32.mrb[0].mxu0
          %v625 = vpop.f32.mrb[0].mxu0
          %v626 = vpop.f32.mrb[0].mxu0
          %627 = vdwg.mxu0
          %v628 = vpack.c.bf16 %v623, %v623
          %629 = vst [vmem:[#allocation2] sm:$0xf] %v628
          %v630 = vld [vmem:[%s499] sm:$0xf]
          %v631 = vld [vmem:[#allocation13] sm:$0xf]
          %v632 = vld [vmem:[#allocation13 + $0x4] sm:$0xf]
          %v633 = vld [vmem:[#allocation13 + $0x8] sm:$0x3]
          %v637 = vunpack.c.l.b16 %v631
          %v638 = vunpack.c.l.b16 %v632
          %v639 = vunpack.c.l.b16 %v633
          %v640 = vpack.c.b16 %v638, %v637
          %v641 = vpack.c.b16 %v639, %v639
          %vm643 = vcmask 162816
          %v645 = vsel %vm643, %v630, 0
          %vm647 = vcmask 1041408
          %v649 = vsel %vm647, %v641, 0
          %651 = vmatprep.subr.bf16.mxu0 0
          %652 = vmatpush1.bf16.msra.mxu0 %v640
          %653 = vmatprep.subr.bf16.mxu0 0
          %654 = vmatpush1.bf16.msra.mxu0 %v649
          %655 = vmatprep.subr.bf16.mxu0 0
          %656 = vmatpush1.bf16.msra.mxu0 0
          %657 = vmatprep.subr.bf16.mxu0 0
          %658 = vmatpush1.bf16.msra.mxu0 0
          %659 = vmatprep.subr.bf16.mxu0 0
          %660 = vmatpush1.bf16.msra.mxu0 0
          %661 = vmatprep.subr.bf16.mxu0 0
          %662 = vmatpush1.bf16.msra.mxu0 0
          %663 = vmatprep.subr.bf16.mxu0 0
          %664 = vmatpush1.bf16.msra.mxu0 0
          %665 = vmatprep.subr.bf16.mxu0 0
          %666 = vmatpush1.bf16.msra.mxu0 0
          %667 = vmatprep.subr.bf16.mxu0 0
          %668 = vmatpush1.bf16.msra.mxu0 0
          %669 = vmatprep.subr.bf16.mxu0 0
          %670 = vmatpush1.bf16.msra.mxu0 0
          %671 = vmatprep.subr.bf16.mxu0 0
          %672 = vmatpush1.bf16.msra.mxu0 0
          %673 = vmatprep.subr.bf16.mxu0 0
          %674 = vmatpush1.bf16.msra.mxu0 0
          %675 = vmatprep.subr.bf16.mxu0 0
          %676 = vmatpush1.bf16.msra.mxu0 0
          %677 = vmatprep.subr.bf16.mxu0 0
          %678 = vmatpush1.bf16.msra.mxu0 0
          %679 = vmatprep.subr.bf16.mxu0 0
          %680 = vmatpush1.bf16.msra.mxu0 0
          %681 = vmatprep.subr.bf16.mxu0 0
          %682 = vmatpush1.bf16.msra.mxu0 0
          %683 = vmatprep.mubr.bf16.mxu0 0
          %684 = vmatmul.mubr.bf16.gmra.mrb[0].mxu0 %v645
          %v685 = vpop.f32.mrb[0].mxu0
          %v686 = vadd.f32 0.0, %v685
          %v687 = vpop.f32.mrb[0].mxu0
          %v688 = vpop.f32.mrb[0].mxu0
          %v689 = vpop.f32.mrb[0].mxu0
          %690 = vdwg.mxu0
          %v691 = vpack.c.bf16 %v686, %v686
          %692 = vst [vmem:[#allocation3] sm:$0xf] %v691
        $region96: #{tpu_custom_call.1} parent=67 // pred_fallthru
          _
        %v693 = vld [vmem:[%s481] sm:$0xf]
        %v694 = vld [vmem:[#allocation11] sm:$0xf]
        %v695 = vld [vmem:[#allocation11 + $0x4] sm:$0xf]
        %v698 = vunpack.c.l.b16 %v694
        %v699 = vunpack.c.l.b16 %v695
        %v700 = vpack.c.b16 %v699, %v698
        %vm702 = vcmask 130048
        %v704 = vsel %vm702, %v693, 0
        %706 = vmatprep.subr.bf16.mxu0 0
        %707 = vmatpush1.bf16.msra.mxu0 %v700
        %708 = vmatprep.subr.bf16.mxu0 0
        %709 = vmatpush1.bf16.msra.mxu0 0
        %710 = vmatprep.subr.bf16.mxu0 0
        %711 = vmatpush1.bf16.msra.mxu0 0
        %712 = vmatprep.subr.bf16.mxu0 0
        %713 = vmatpush1.bf16.msra.mxu0 0
        %714 = vmatprep.subr.bf16.mxu0 0
        %715 = vmatpush1.bf16.msra.mxu0 0
        %716 = vmatprep.subr.bf16.mxu0 0
        %717 = vmatpush1.bf16.msra.mxu0 0
        %718 = vmatprep.subr.bf16.mxu0 0
        %719 = vmatpush1.bf16.msra.mxu0 0
        %720 = vmatprep.subr.bf16.mxu0 0
        %721 = vmatpush1.bf16.msra.mxu0 0
        %722 = vmatprep.subr.bf16.mxu0 0
        %723 = vmatpush1.bf16.msra.mxu0 0
        %724 = vmatprep.subr.bf16.mxu0 0
        %725 = vmatpush1.bf16.msra.mxu0 0
        %726 = vmatprep.subr.bf16.mxu0 0
        %727 = vmatpush1.bf16.msra.mxu0 0
        %728 = vmatprep.subr.bf16.mxu0 0
        %729 = vmatpush1.bf16.msra.mxu0 0
        %730 = vmatprep.subr.bf16.mxu0 0
        %731 = vmatpush1.bf16.msra.mxu0 0
        %732 = vmatprep.subr.bf16.mxu0 0
        %733 = vmatpush1.bf16.msra.mxu0 0
        %734 = vmatprep.subr.bf16.mxu0 0
        %735 = vmatpush1.bf16.msra.mxu0 0
        %736 = vmatprep.subr.bf16.mxu0 0
        %737 = vmatpush1.bf16.msra.mxu0 0
        %738 = vmatprep.mubr.bf16.mxu0 0
        %739 = vmatmul.mubr.bf16.gmra.mrb[0].mxu0 %v704
        %v740 = vpop.f32.mrb[0].mxu0
        %v741 = vadd.f32 0.0, %v740
        %v742 = vpop.f32.mrb[0].mxu0
        %v743 = vpop.f32.mrb[0].mxu0
        %v744 = vpop.f32.mrb[0].mxu0
        %745 = vdwg.mxu0
        %v746 = vpack.c.bf16 %v741, %v741
        %v747 = vld [vmem:[#allocation2] sm:$0xf]
        %v748 = vld [vmem:[#allocation3] sm:$0xf]
        %v750 = vsel %vm702, %v746, 0
        %v753 = vsel %vm702, %v747, 0
        %755 = vmatprep.subr.bf16.mxu0 0
        %756 = vmatpush1.bf16.xpose.msra.mxu0 %v753
        %757 = vmatprep.subr.bf16.mxu0 0
        %758 = vmatpush1.bf16.xpose.msra.mxu0 0
        %759 = vmatprep.subr.bf16.mxu0 0
        %760 = vmatpush1.bf16.xpose.msra.mxu0 0
        %761 = vmatprep.subr.bf16.mxu0 0
        %762 = vmatpush1.bf16.xpose.msra.mxu0 0
        %763 = vmatprep.subr.bf16.mxu0 0
        %764 = vmatpush1.bf16.xpose.msra.mxu0 0
        %765 = vmatprep.subr.bf16.mxu0 0
        %766 = vmatpush1.bf16.xpose.msra.mxu0 0
        %767 = vmatprep.subr.bf16.mxu0 0
        %768 = vmatpush1.bf16.xpose.msra.mxu0 0
        %769 = vmatprep.subr.bf16.mxu0 0
        %770 = vmatpush1.bf16.xpose.msra.mxu0 0
        %771 = vmatprep.subr.bf16.mxu0 0
        %772 = vmatpush1.bf16.xpose.msra.mxu0 0
        %773 = vmatprep.subr.bf16.mxu0 0
        %774 = vmatpush1.bf16.xpose.msra.mxu0 0
        %775 = vmatprep.subr.bf16.mxu0 0
        %776 = vmatpush1.bf16.xpose.msra.mxu0 0
        %777 = vmatprep.subr.bf16.mxu0 0
        %778 = vmatpush1.bf16.xpose.msra.mxu0 0
        %779 = vmatprep.subr.bf16.mxu0 0
        %780 = vmatpush1.bf16.xpose.msra.mxu0 0
        %781 = vmatprep.subr.bf16.mxu0 0
        %782 = vmatpush1.bf16.xpose.msra.mxu0 0
        %783 = vmatprep.subr.bf16.mxu0 0
        %784 = vmatpush1.bf16.xpose.msra.mxu0 0
        %785 = vmatprep.subr.bf16.mxu0 0
        %786 = vmatpush1.bf16.xpose.msra.mxu0 0
        %787 = vmatprep.mubr.bf16.mxu0 0
        %788 = vmatmul.mubr.bf16.gmra.mrb[0].mxu0 %v750
        %v789 = vpop.f32.mrb[0].mxu0
        %v790 = vadd.f32 0.0, %v789
        %v791 = vpop.f32.mrb[0].mxu0
        %v792 = vpop.f32.mrb[0].mxu0
        %v793 = vpop.f32.mrb[0].mxu0
        %794 = vdwg.mxu0
        %vm795 = vcmask 64512
        %v796 = vsel %vm795, %v790, -inf
        %797 = vmax.xlane.f32.xlu0 %v796
        %v798 = vpop.xlane.xlu0 %797
        %v799 = vsub.f32 %v790, %v798
        %v800 = vmul.f32 %v799, 1.442695
        %v801 = vpow.pop %v800
        %v802 = vsel %vm795, %v801, 0.0
        %803 = vadd.xlane.f32.xlu0 %v802
        %v804 = vpop.xlane.xlu0 %803
        %v805 = vrcp.pop %v804
        %v806 = vmul.f32 %v801, %v805
        %v807 = vpack.c.bf16 %v806, %v806
        %v809 = vsel %vm795, %v807, 0
        %vm811 = vcmask 1043456
        %v813 = vsel %vm811, %v748, 0
        %815 = vmatprep.subr.bf16.mxu0 0
        %816 = vmatpush1.bf16.msra.mxu0 %v813
        %817 = vmatprep.subr.bf16.mxu0 0
        %818 = vmatpush1.bf16.msra.mxu0 0
        %819 = vmatprep.subr.bf16.mxu0 0
        %820 = vmatpush1.bf16.msra.mxu0 0
        %821 = vmatprep.subr.bf16.mxu0 0
        %822 = vmatpush1.bf16.msra.mxu0 0
        %823 = vmatprep.subr.bf16.mxu0 0
        %824 = vmatpush1.bf16.msra.mxu0 0
        %825 = vmatprep.subr.bf16.mxu0 0
        %826 = vmatpush1.bf16.msra.mxu0 0
        %827 = vmatprep.subr.bf16.mxu0 0
        %828 = vmatpush1.bf16.msra.mxu0 0
        %829 = vmatprep.subr.bf16.mxu0 0
        %830 = vmatpush1.bf16.msra.mxu0 0
        %831 = vmatprep.subr.bf16.mxu0 0
        %832 = vmatpush1.bf16.msra.mxu0 0
        %833 = vmatprep.subr.bf16.mxu0 0
        %834 = vmatpush1.bf16.msra.mxu0 0
        %835 = vmatprep.subr.bf16.mxu0 0
        %836 = vmatpush1.bf16.msra.mxu0 0
        %837 = vmatprep.subr.bf16.mxu0 0
        %838 = vmatpush1.bf16.msra.mxu0 0
        %839 = vmatprep.subr.bf16.mxu0 0
        %840 = vmatpush1.bf16.msra.mxu0 0
        %841 = vmatprep.subr.bf16.mxu0 0
        %842 = vmatpush1.bf16.msra.mxu0 0
        %843 = vmatprep.subr.bf16.mxu0 0
        %844 = vmatpush1.bf16.msra.mxu0 0
        %845 = vmatprep.subr.bf16.mxu0 0
        %846 = vmatpush1.bf16.msra.mxu0 0
        %847 = vmatprep.mubr.bf16.mxu0 0
        %848 = vmatmul.mubr.bf16.gmra.mrb[0].mxu0 %v809
        %v849 = vpop.f32.mrb[0].mxu0
        %v850 = vadd.f32 0.0, %v849
        %v851 = vpop.f32.mrb[0].mxu0
        %v852 = vpop.f32.mrb[0].mxu0
        %v853 = vpop.f32.mrb[0].mxu0
        %854 = vdwg.mxu0
        %855 = vst.msk [vmem:[#allocation4] sm:$0xff] %vm702, %v850
        %857 = vrot.lane.b32.xlu0 %v746, 112
        %v858 = vpop.permute.xlu0 %857
        %v860 = vunpack.c.l.b16 %v747
        %v861 = vpack.c.b16 %v860, %v860
        %862 = vrot.lane.b32.xlu0 %v861, 112
        %v863 = vpop.permute.xlu0 %862
        %v865 = vsel %vm702, %v858, 0
        %v868 = vsel %vm702, %v863, 0
        %870 = vmatprep.subr.bf16.mxu0 0
        %871 = vmatpush1.bf16.xpose.msra.mxu0 %v868
        %872 = vmatprep.subr.bf16.mxu0 0
        %873 = vmatpush1.bf16.xpose.msra.mxu0 0
        %874 = vmatprep.subr.bf16.mxu0 0
        %875 = vmatpush1.bf16.xpose.msra.mxu0 0
        %876 = vmatprep.subr.bf16.mxu0 0
        %877 = vmatpush1.bf16.xpose.msra.mxu0 0
        %878 = vmatprep.subr.bf16.mxu0 0
        %879 = vmatpush1.bf16.xpose.msra.mxu0 0
        %880 = vmatprep.subr.bf16.mxu0 0
        %881 = vmatpush1.bf16.xpose.msra.mxu0 0
        %882 = vmatprep.subr.bf16.mxu0 0
        %883 = vmatpush1.bf16.xpose.msra.mxu0 0
        %884 = vmatprep.subr.bf16.mxu0 0
        %885 = vmatpush1.bf16.xpose.msra.mxu0 0
        %886 = vmatprep.subr.bf16.mxu0 0
        %887 = vmatpush1.bf16.xpose.msra.mxu0 0
        %888 = vmatprep.subr.bf16.mxu0 0
        %889 = vmatpush1.bf16.xpose.msra.mxu0 0
        %890 = vmatprep.subr.bf16.mxu0 0
        %891 = vmatpush1.bf16.xpose.msra.mxu0 0
        %892 = vmatprep.subr.bf16.mxu0 0
        %893 = vmatpush1.bf16.xpose.msra.mxu0 0
        %894 = vmatprep.subr.bf16.mxu0 0
        %895 = vmatpush1.bf16.xpose.msra.mxu0 0
        %896 = vmatprep.subr.bf16.mxu0 0
        %897 = vmatpush1.bf16.xpose.msra.mxu0 0
        %898 = vmatprep.subr.bf16.mxu0 0
        %899 = vmatpush1.bf16.xpose.msra.mxu0 0
        %900 = vmatprep.subr.bf16.mxu0 0
        %901 = vmatpush1.bf16.xpose.msra.mxu0 0
        %902 = vmatprep.mubr.bf16.mxu0 0
        %903 = vmatmul.mubr.bf16.gmra.mrb[0].mxu0 %v865
        %v904 = vpop.f32.mrb[0].mxu0
        %v905 = vadd.f32 0.0, %v904
        %v906 = vpop.f32.mrb[0].mxu0
        %v907 = vpop.f32.mrb[0].mxu0
        %v908 = vpop.f32.mrb[0].mxu0
        %909 = vdwg.mxu0
        %v910 = vsel %vm795, %v905, -inf
        %911 = vmax.xlane.f32.xlu0 %v910
        %v912 = vpop.xlane.xlu0 %911
        %v913 = vsub.f32 %v905, %v912
        %v914 = vmul.f32 %v913, 1.442695
        %v915 = vpow.pop %v914
        %v916 = vsel %vm795, %v915, 0.0
        %917 = vadd.xlane.f32.xlu0 %v916
        %v918 = vpop.xlane.xlu0 %917
        %v919 = vrcp.pop %v918
        %v920 = vmul.f32 %v915, %v919
        %v921 = vpack.c.bf16 %v920, %v920
        %v923 = vunpack.c.l.b16 %v748
        %v924 = vpack.c.b16 %v923, %v923
        %925 = vrot.lane.b32.xlu0 %v924, 112
        %v926 = vpop.permute.xlu0 %925
        %v928 = vsel %vm795, %v921, 0
        %v931 = vsel %vm811, %v926, 0
        %933 = vmatprep.subr.bf16.mxu0 0
        %934 = vmatpush1.bf16.msra.mxu0 %v931
        %935 = vmatprep.subr.bf16.mxu0 0
        %936 = vmatpush1.bf16.msra.mxu0 0
        %937 = vmatprep.subr.bf16.mxu0 0
        %938 = vmatpush1.bf16.msra.mxu0 0
        %939 = vmatprep.subr.bf16.mxu0 0
        %940 = vmatpush1.bf16.msra.mxu0 0
        %941 = vmatprep.subr.bf16.mxu0 0
        %942 = vmatpush1.bf16.msra.mxu0 0
        %943 = vmatprep.subr.bf16.mxu0 0
        %944 = vmatpush1.bf16.msra.mxu0 0
        %945 = vmatprep.subr.bf16.mxu0 0
        %946 = vmatpush1.bf16.msra.mxu0 0
        %947 = vmatprep.subr.bf16.mxu0 0
        %948 = vmatpush1.bf16.msra.mxu0 0
        %949 = vmatprep.subr.bf16.mxu0 0
        %950 = vmatpush1.bf16.msra.mxu0 0
        %951 = vmatprep.subr.bf16.mxu0 0
        %952 = vmatpush1.bf16.msra.mxu0 0
        %953 = vmatprep.subr.bf16.mxu0 0
        %954 = vmatpush1.bf16.msra.mxu0 0
        %955 = vmatprep.subr.bf16.mxu0 0
        %956 = vmatpush1.bf16.msra.mxu0 0
        %957 = vmatprep.subr.bf16.mxu0 0
        %958 = vmatpush1.bf16.msra.mxu0 0
        %959 = vmatprep.subr.bf16.mxu0 0
        %960 = vmatpush1.bf16.msra.mxu0 0
        %961 = vmatprep.subr.bf16.mxu0 0
        %962 = vmatpush1.bf16.msra.mxu0 0
        %963 = vmatprep.subr.bf16.mxu0 0
        %964 = vmatpush1.bf16.msra.mxu0 0
        %965 = vmatprep.mubr.bf16.mxu0 0
        %966 = vmatmul.mubr.bf16.gmra.mrb[0].mxu0 %v928
        %v967 = vpop.f32.mrb[0].mxu0
        %v968 = vadd.f32 0.0, %v967
        %v969 = vpop.f32.mrb[0].mxu0
        %v970 = vpop.f32.mrb[0].mxu0
        %v971 = vpop.f32.mrb[0].mxu0
        %972 = vdwg.mxu0
        %974 = vrot.lane.b32.xlu0 %v968, 16
        %v975 = vpop.permute.xlu0 %974
        %vm977 = vcmask 261248
        %978 = vst.msk [vmem:[#allocation4] sm:$0xff] %vm977, %v975
        %979 = vrot.lane.b32.xlu0 %v746, 96
        %v980 = vpop.permute.xlu0 %979
        %981 = vrot.lane.b32.xlu0 %v861, 96
        %v982 = vpop.permute.xlu0 %981
        %v984 = vsel %vm702, %v980, 0
        %v987 = vsel %vm702, %v982, 0
        %989 = vmatprep.subr.bf16.mxu0 0
        %990 = vmatpush1.bf16.xpose.msra.mxu0 %v987
        %991 = vmatprep.subr.bf16.mxu0 0
        %992 = vmatpush1.bf16.xpose.msra.mxu0 0
        %993 = vmatprep.subr.bf16.mxu0 0
        %994 = vmatpush1.bf16.xpose.msra.mxu0 0
        %995 = vmatprep.subr.bf16.mxu0 0
        %996 = vmatpush1.bf16.xpose.msra.mxu0 0
        %997 = vmatprep.subr.bf16.mxu0 0
        %998 = vmatpush1.bf16.xpose.msra.mxu0 0
        %999 = vmatprep.subr.bf16.mxu0 0
        %1000 = vmatpush1.bf16.xpose.msra.mxu0 0
        %1001 = vmatprep.subr.bf16.mxu0 0
        %1002 = vmatpush1.bf16.xpose.msra.mxu0 0
        %1003 = vmatprep.subr.bf16.mxu0 0
        %1004 = vmatpush1.bf16.xpose.msra.mxu0 0
        %1005 = vmatprep.subr.bf16.mxu0 0
        %1006 = vmatpush1.bf16.xpose.msra.mxu0 0
        %1007 = vmatprep.subr.bf16.mxu0 0
        %1008 = vmatpush1.bf16.xpose.msra.mxu0 0
        %1009 = vmatprep.subr.bf16.mxu0 0
        %1010 = vmatpush1.bf16.xpose.msra.mxu0 0
        %1011 = vmatprep.subr.bf16.mxu0 0
        %1012 = vmatpush1.bf16.xpose.msra.mxu0 0
        %1013 = vmatprep.subr.bf16.mxu0 0
        %1014 = vmatpush1.bf16.xpose.msra.mxu0 0
        %1015 = vmatprep.subr.bf16.mxu0 0
        %1016 = vmatpush1.bf16.xpose.msra.mxu0 0
        %1017 = vmatprep.subr.bf16.mxu0 0
        %1018 = vmatpush1.bf16.xpose.msra.mxu0 0
        %1019 = vmatprep.subr.bf16.mxu0 0
        %1020 = vmatpush1.bf16.xpose.msra.mxu0 0
        %1021 = vmatprep.mubr.bf16.mxu0 0
        %1022 = vmatmul.mubr.bf16.gmra.mrb[0].mxu0 %v984
        %v1023 = vpop.f32.mrb[0].mxu0
        %v1024 = vadd.f32 0.0, %v1023
        %v1025 = vpop.f32.mrb[0].mxu0
        %v1026 = vpop.f32.mrb[0].mxu0
        %v1027 = vpop.f32.mrb[0].mxu0
        %1028 = vdwg.mxu0
        %v1029 = vsel %vm795, %v1024, -inf
        %1030 = vmax.xlane.f32.xlu0 %v1029
        %v1031 = vpop.xlane.xlu0 %1030
        %v1032 = vsub.f32 %v1024, %v1031
        %v1033 = vmul.f32 %v1032, 1.442695
        %v1034 = vpow.pop %v1033
        %v1035 = vsel %vm795, %v1034, 0.0
        %1036 = vadd.xlane.f32.xlu0 %v1035
        %v1037 = vpop.xlane.xlu0 %1036
        %v1038 = vrcp.pop %v1037
        %v1039 = vmul.f32 %v1034, %v1038
        %v1040 = vpack.c.bf16 %v1039, %v1039
        %1041 = vrot.lane.b32.xlu0 %v924, 96
        %v1042 = vpop.permute.xlu0 %1041
        %v1044 = vsel %vm795, %v1040, 0
        %v1047 = vsel %vm811, %v1042, 0
        %1049 = vmatprep.subr.bf16.mxu0 0
        %1050 = vmatpush1.bf16.msra.mxu0 %v1047
        %1051 = vmatprep.subr.bf16.mxu0 0
        %1052 = vmatpush1.bf16.msra.mxu0 0
        %1053 = vmatprep.subr.bf16.mxu0 0
        %1054 = vmatpush1.bf16.msra.mxu0 0
        %1055 = vmatprep.subr.bf16.mxu0 0
        %1056 = vmatpush1.bf16.msra.mxu0 0
        %1057 = vmatprep.subr.bf16.mxu0 0
        %1058 = vmatpush1.bf16.msra.mxu0 0
        %1059 = vmatprep.subr.bf16.mxu0 0
        %1060 = vmatpush1.bf16.msra.mxu0 0
        %1061 = vmatprep.subr.bf16.mxu0 0
        %1062 = vmatpush1.bf16.msra.mxu0 0
        %1063 = vmatprep.subr.bf16.mxu0 0
        %1064 = vmatpush1.bf16.msra.mxu0 0
        %1065 = vmatprep.subr.bf16.mxu0 0
        %1066 = vmatpush1.bf16.msra.mxu0 0
        %1067 = vmatprep.subr.bf16.mxu0 0
        %1068 = vmatpush1.bf16.msra.mxu0 0
        %1069 = vmatprep.subr.bf16.mxu0 0
        %1070 = vmatpush1.bf16.msra.mxu0 0
        %1071 = vmatprep.subr.bf16.mxu0 0
        %1072 = vmatpush1.bf16.msra.mxu0 0
        %1073 = vmatprep.subr.bf16.mxu0 0
        %1074 = vmatpush1.bf16.msra.mxu0 0
        %1075 = vmatprep.subr.bf16.mxu0 0
        %1076 = vmatpush1.bf16.msra.mxu0 0
        %1077 = vmatprep.subr.bf16.mxu0 0
        %1078 = vmatpush1.bf16.msra.mxu0 0
        %1079 = vmatprep.subr.bf16.mxu0 0
        %1080 = vmatpush1.bf16.msra.mxu0 0
        %1081 = vmatprep.mubr.bf16.mxu0 0
        %1082 = vmatmul.mubr.bf16.gmra.mrb[0].mxu0 %v1044
        %v1083 = vpop.f32.mrb[0].mxu0
        %v1084 = vadd.f32 0.0, %v1083
        %v1085 = vpop.f32.mrb[0].mxu0
        %v1086 = vpop.f32.mrb[0].mxu0
        %v1087 = vpop.f32.mrb[0].mxu0
        %1088 = vdwg.mxu0
        %1090 = vrot.lane.b32.xlu0 %v1084, 32
        %v1091 = vpop.permute.xlu0 %1090
        %vm1093 = vcmask 392448
        %1094 = vst.msk [vmem:[#allocation4] sm:$0xff] %vm1093, %v1091
        %1095 = vrot.lane.b32.xlu0 %v746, 80
        %v1096 = vpop.permute.xlu0 %1095
        %1097 = vrot.lane.b32.xlu0 %v861, 80
        %v1098 = vpop.permute.xlu0 %1097
        %v1100 = vsel %vm702, %v1096, 0
        %v1103 = vsel %vm702, %v1098, 0
        %1105 = vmatprep.subr.bf16.mxu0 0
        %1106 = vmatpush1.bf16.xpose.msra.mxu0 %v1103
        %1107 = vmatprep.subr.bf16.mxu0 0
        %1108 = vmatpush1.bf16.xpose.msra.mxu0 0
        %1109 = vmatprep.subr.bf16.mxu0 0
        %1110 = vmatpush1.bf16.xpose.msra.mxu0 0
        %1111 = vmatprep.subr.bf16.mxu0 0
        %1112 = vmatpush1.bf16.xpose.msra.mxu0 0
        %1113 = vmatprep.subr.bf16.mxu0 0
        %1114 = vmatpush1.bf16.xpose.msra.mxu0 0
        %1115 = vmatprep.subr.bf16.mxu0 0
        %1116 = vmatpush1.bf16.xpose.msra.mxu0 0
        %1117 = vmatprep.subr.bf16.mxu0 0
        %1118 = vmatpush1.bf16.xpose.msra.mxu0 0
        %1119 = vmatprep.subr.bf16.mxu0 0
        %1120 = vmatpush1.bf16.xpose.msra.mxu0 0
        %1121 = vmatprep.subr.bf16.mxu0 0
        %1122 = vmatpush1.bf16.xpose.msra.mxu0 0
        %1123 = vmatprep.subr.bf16.mxu0 0
        %1124 = vmatpush1.bf16.xpose.msra.mxu0 0
        %1125 = vmatprep.subr.bf16.mxu0 0
        %1126 = vmatpush1.bf16.xpose.msra.mxu0 0
        %1127 = vmatprep.subr.bf16.mxu0 0
        %1128 = vmatpush1.bf16.xpose.msra.mxu0 0
        %1129 = vmatprep.subr.bf16.mxu0 0
        %1130 = vmatpush1.bf16.xpose.msra.mxu0 0
        %1131 = vmatprep.subr.bf16.mxu0 0
        %1132 = vmatpush1.bf16.xpose.msra.mxu0 0
        %1133 = vmatprep.subr.bf16.mxu0 0
        %1134 = vmatpush1.bf16.xpose.msra.mxu0 0
        %1135 = vmatprep.subr.bf16.mxu0 0
        %1136 = vmatpush1.bf16.xpose.msra.mxu0 0
        %1137 = vmatprep.mubr.bf16.mxu0 0
        %1138 = vmatmul.mubr.bf16.gmra.mrb[0].mxu0 %v1100
        %v1139 = vpop.f32.mrb[0].mxu0
        %v1140 = vadd.f32 0.0, %v1139
        %v1141 = vpop.f32.mrb[0].mxu0
        %v1142 = vpop.f32.mrb[0].mxu0
        %v1143 = vpop.f32.mrb[0].mxu0
        %1144 = vdwg.mxu0
        %v1145 = vsel %vm795, %v1140, -inf
        %1146 = vmax.xlane.f32.xlu0 %v1145
        %v1147 = vpop.xlane.xlu0 %1146
        %v1148 = vsub.f32 %v1140, %v1147
        %v1149 = vmul.f32 %v1148, 1.442695
        %v1150 = vpow.pop %v1149
        %v1151 = vsel %vm795, %v1150, 0.0
        %1152 = vadd.xlane.f32.xlu0 %v1151
        %v1153 = vpop.xlane.xlu0 %1152
        %v1154 = vrcp.pop %v1153
        %v1155 = vmul.f32 %v1150, %v1154
        %v1156 = vpack.c.bf16 %v1155, %v1155
        %1157 = vrot.lane.b32.xlu0 %v924, 80
        %v1158 = vpop.permute.xlu0 %1157
        %v1160 = vsel %vm795, %v1156, 0
        %v1163 = vsel %vm811, %v1158, 0
        %1165 = vmatprep.subr.bf16.mxu0 0
        %1166 = vmatpush1.bf16.msra.mxu0 %v1163
        %1167 = vmatprep.subr.bf16.mxu0 0
        %1168 = vmatpush1.bf16.msra.mxu0 0
        %1169 = vmatprep.subr.bf16.mxu0 0
        %1170 = vmatpush1.bf16.msra.mxu0 0
        %1171 = vmatprep.subr.bf16.mxu0 0
        %1172 = vmatpush1.bf16.msra.mxu0 0
        %1173 = vmatprep.subr.bf16.mxu0 0
        %1174 = vmatpush1.bf16.msra.mxu0 0
        %1175 = vmatprep.subr.bf16.mxu0 0
        %1176 = vmatpush1.bf16.msra.mxu0 0
        %1177 = vmatprep.subr.bf16.mxu0 0
        %1178 = vmatpush1.bf16.msra.mxu0 0
        %1179 = vmatprep.subr.bf16.mxu0 0
        %1180 = vmatpush1.bf16.msra.mxu0 0
        %1181 = vmatprep.subr.bf16.mxu0 0
        %1182 = vmatpush1.bf16.msra.mxu0 0
        %1183 = vmatprep.subr.bf16.mxu0 0
        %1184 = vmatpush1.bf16.msra.mxu0 0
        %1185 = vmatprep.subr.bf16.mxu0 0
        %1186 = vmatpush1.bf16.msra.mxu0 0
        %1187 = vmatprep.subr.bf16.mxu0 0
        %1188 = vmatpush1.bf16.msra.mxu0 0
        %1189 = vmatprep.subr.bf16.mxu0 0
        %1190 = vmatpush1.bf16.msra.mxu0 0
        %1191 = vmatprep.subr.bf16.mxu0 0
        %1192 = vmatpush1.bf16.msra.mxu0 0
        %1193 = vmatprep.subr.bf16.mxu0 0
        %1194 = vmatpush1.bf16.msra.mxu0 0
        %1195 = vmatprep.subr.bf16.mxu0 0
        %1196 = vmatpush1.bf16.msra.mxu0 0
        %1197 = vmatprep.mubr.bf16.mxu0 0
        %1198 = vmatmul.mubr.bf16.gmra.mrb[0].mxu0 %v1160
        %v1199 = vpop.f32.mrb[0].mxu0
        %v1200 = vadd.f32 0.0, %v1199
        %v1201 = vpop.f32.mrb[0].mxu0
        %v1202 = vpop.f32.mrb[0].mxu0
        %v1203 = vpop.f32.mrb[0].mxu0
        %1204 = vdwg.mxu0
        %1206 = vrot.lane.b32.xlu0 %v1200, 48
        %v1207 = vpop.permute.xlu0 %1206
        %vm1209 = vcmask 523648
        %1210 = vst.msk [vmem:[#allocation4] sm:$0xff] %vm1209, %v1207
        %1211 = vrot.lane.b32.xlu0 %v746, 64
        %v1212 = vpop.permute.xlu0 %1211
        %1213 = vrot.lane.b32.xlu0 %v861, 64
        %v1214 = vpop.permute.xlu0 %1213
        %v1216 = vsel %vm702, %v1212, 0
        %v1219 = vsel %vm702, %v1214, 0
        %1221 = vmatprep.subr.bf16.mxu0 0
        %1222 = vmatpush1.bf16.xpose.msra.mxu0 %v1219
        %1223 = vmatprep.subr.bf16.mxu0 0
        %1224 = vmatpush1.bf16.xpose.msra.mxu0 0
        %1225 = vmatprep.subr.bf16.mxu0 0
        %1226 = vmatpush1.bf16.xpose.msra.mxu0 0
        %1227 = vmatprep.subr.bf16.mxu0 0
        %1228 = vmatpush1.bf16.xpose.msra.mxu0 0
        %1229 = vmatprep.subr.bf16.mxu0 0
        %1230 = vmatpush1.bf16.xpose.msra.mxu0 0
        %1231 = vmatprep.subr.bf16.mxu0 0
        %1232 = vmatpush1.bf16.xpose.msra.mxu0 0
        %1233 = vmatprep.subr.bf16.mxu0 0
        %1234 = vmatpush1.bf16.xpose.msra.mxu0 0
        %1235 = vmatprep.subr.bf16.mxu0 0
        %1236 = vmatpush1.bf16.xpose.msra.mxu0 0
        %1237 = vmatprep.subr.bf16.mxu0 0
        %1238 = vmatpush1.bf16.xpose.msra.mxu0 0
        %1239 = vmatprep.subr.bf16.mxu0 0
        %1240 = vmatpush1.bf16.xpose.msra.mxu0 0
        %1241 = vmatprep.subr.bf16.mxu0 0
        %1242 = vmatpush1.bf16.xpose.msra.mxu0 0
        %1243 = vmatprep.subr.bf16.mxu0 0
        %1244 = vmatpush1.bf16.xpose.msra.mxu0 0
        %1245 = vmatprep.subr.bf16.mxu0 0
        %1246 = vmatpush1.bf16.xpose.msra.mxu0 0
        %1247 = vmatprep.subr.bf16.mxu0 0
        %1248 = vmatpush1.bf16.xpose.msra.mxu0 0
        %1249 = vmatprep.subr.bf16.mxu0 0
        %1250 = vmatpush1.bf16.xpose.msra.mxu0 0
        %1251 = vmatprep.subr.bf16.mxu0 0
        %1252 = vmatpush1.bf16.xpose.msra.mxu0 0
        %1253 = vmatprep.mubr.bf16.mxu0 0
        %1254 = vmatmul.mubr.bf16.gmra.mrb[0].mxu0 %v1216
        %v1255 = vpop.f32.mrb[0].mxu0
        %v1256 = vadd.f32 0.0, %v1255
        %v1257 = vpop.f32.mrb[0].mxu0
        %v1258 = vpop.f32.mrb[0].mxu0
        %v1259 = vpop.f32.mrb[0].mxu0
        %1260 = vdwg.mxu0
        %v1261 = vsel %vm795, %v1256, -inf
        %1262 = vmax.xlane.f32.xlu0 %v1261
        %v1263 = vpop.xlane.xlu0 %1262
        %v1264 = vsub.f32 %v1256, %v1263
        %v1265 = vmul.f32 %v1264, 1.442695
        %v1266 = vpow.pop %v1265
        %v1267 = vsel %vm795, %v1266, 0.0
        %1268 = vadd.xlane.f32.xlu0 %v1267
        %v1269 = vpop.xlane.xlu0 %1268
        %v1270 = vrcp.pop %v1269
        %v1271 = vmul.f32 %v1266, %v1270
        %v1272 = vpack.c.bf16 %v1271, %v1271
        %1273 = vrot.lane.b32.xlu0 %v924, 64
        %v1274 = vpop.permute.xlu0 %1273
        %v1276 = vsel %vm795, %v1272, 0
        %v1279 = vsel %vm811, %v1274, 0
        %1281 = vmatprep.subr.bf16.mxu0 0
        %1282 = vmatpush1.bf16.msra.mxu0 %v1279
        %1283 = vmatprep.subr.bf16.mxu0 0
        %1284 = vmatpush1.bf16.msra.mxu0 0
        %1285 = vmatprep.subr.bf16.mxu0 0
        %1286 = vmatpush1.bf16.msra.mxu0 0
        %1287 = vmatprep.subr.bf16.mxu0 0
        %1288 = vmatpush1.bf16.msra.mxu0 0
        %1289 = vmatprep.subr.bf16.mxu0 0
        %1290 = vmatpush1.bf16.msra.mxu0 0
        %1291 = vmatprep.subr.bf16.mxu0 0
        %1292 = vmatpush1.bf16.msra.mxu0 0
        %1293 = vmatprep.subr.bf16.mxu0 0
        %1294 = vmatpush1.bf16.msra.mxu0 0
        %1295 = vmatprep.subr.bf16.mxu0 0
        %1296 = vmatpush1.bf16.msra.mxu0 0
        %1297 = vmatprep.subr.bf16.mxu0 0
        %1298 = vmatpush1.bf16.msra.mxu0 0
        %1299 = vmatprep.subr.bf16.mxu0 0
        %1300 = vmatpush1.bf16.msra.mxu0 0
        %1301 = vmatprep.subr.bf16.mxu0 0
        %1302 = vmatpush1.bf16.msra.mxu0 0
        %1303 = vmatprep.subr.bf16.mxu0 0
        %1304 = vmatpush1.bf16.msra.mxu0 0
        %1305 = vmatprep.subr.bf16.mxu0 0
        %1306 = vmatpush1.bf16.msra.mxu0 0
        %1307 = vmatprep.subr.bf16.mxu0 0
        %1308 = vmatpush1.bf16.msra.mxu0 0
        %1309 = vmatprep.subr.bf16.mxu0 0
        %1310 = vmatpush1.bf16.msra.mxu0 0
        %1311 = vmatprep.subr.bf16.mxu0 0
        %1312 = vmatpush1.bf16.msra.mxu0 0
        %1313 = vmatprep.mubr.bf16.mxu0 0
        %1314 = vmatmul.mubr.bf16.gmra.mrb[0].mxu0 %v1276
        %v1315 = vpop.f32.mrb[0].mxu0
        %v1316 = vadd.f32 0.0, %v1315
        %v1317 = vpop.f32.mrb[0].mxu0
        %v1318 = vpop.f32.mrb[0].mxu0
        %v1319 = vpop.f32.mrb[0].mxu0
        %1320 = vdwg.mxu0
        %1322 = vrot.lane.b32.xlu0 %v1316, 64
        %v1323 = vpop.permute.xlu0 %1322
        %vm1325 = vcmask 654848
        %1326 = vst.msk [vmem:[#allocation4] sm:$0xff] %vm1325, %v1323
        %1327 = vrot.lane.b32.xlu0 %v746, 48
        %v1328 = vpop.permute.xlu0 %1327
        %1329 = vrot.lane.b32.xlu0 %v861, 48
        %v1330 = vpop.permute.xlu0 %1329
        %v1332 = vsel %vm702, %v1328, 0
        %v1335 = vsel %vm702, %v1330, 0
        %1337 = vmatprep.subr.bf16.mxu0 0
        %1338 = vmatpush1.bf16.xpose.msra.mxu0 %v1335
        %1339 = vmatprep.subr.bf16.mxu0 0
        %1340 = vmatpush1.bf16.xpose.msra.mxu0 0
        %1341 = vmatprep.subr.bf16.mxu0 0
        %1342 = vmatpush1.bf16.xpose.msra.mxu0 0
        %1343 = vmatprep.subr.bf16.mxu0 0
        %1344 = vmatpush1.bf16.xpose.msra.mxu0 0
        %1345 = vmatprep.subr.bf16.mxu0 0
        %1346 = vmatpush1.bf16.xpose.msra.mxu0 0
        %1347 = vmatprep.subr.bf16.mxu0 0
        %1348 = vmatpush1.bf16.xpose.msra.mxu0 0
        %1349 = vmatprep.subr.bf16.mxu0 0
        %1350 = vmatpush1.bf16.xpose.msra.mxu0 0
        %1351 = vmatprep.subr.bf16.mxu0 0
        %1352 = vmatpush1.bf16.xpose.msra.mxu0 0
        %1353 = vmatprep.subr.bf16.mxu0 0
        %1354 = vmatpush1.bf16.xpose.msra.mxu0 0
        %1355 = vmatprep.subr.bf16.mxu0 0
        %1356 = vmatpush1.bf16.xpose.msra.mxu0 0
        %1357 = vmatprep.subr.bf16.mxu0 0
        %1358 = vmatpush1.bf16.xpose.msra.mxu0 0
        %1359 = vmatprep.subr.bf16.mxu0 0
        %1360 = vmatpush1.bf16.xpose.msra.mxu0 0
        %1361 = vmatprep.subr.bf16.mxu0 0
        %1362 = vmatpush1.bf16.xpose.msra.mxu0 0
        %1363 = vmatprep.subr.bf16.mxu0 0
        %1364 = vmatpush1.bf16.xpose.msra.mxu0 0
        %1365 = vmatprep.subr.bf16.mxu0 0
        %1366 = vmatpush1.bf16.xpose.msra.mxu0 0
        %1367 = vmatprep.subr.bf16.mxu0 0
        %1368 = vmatpush1.bf16.xpose.msra.mxu0 0
        %1369 = vmatprep.mubr.bf16.mxu0 0
        %1370 = vmatmul.mubr.bf16.gmra.mrb[0].mxu0 %v1332
        %v1371 = vpop.f32.mrb[0].mxu0
        %v1372 = vadd.f32 0.0, %v1371
        %v1373 = vpop.f32.mrb[0].mxu0
        %v1374 = vpop.f32.mrb[0].mxu0
        %v1375 = vpop.f32.mrb[0].mxu0
        %1376 = vdwg.mxu0
        %v1377 = vsel %vm795, %v1372, -inf
        %1378 = vmax.xlane.f32.xlu0 %v1377
        %v1379 = vpop.xlane.xlu0 %1378
        %v1380 = vsub.f32 %v1372, %v1379
        %v1381 = vmul.f32 %v1380, 1.442695
        %v1382 = vpow.pop %v1381
        %v1383 = vsel %vm795, %v1382, 0.0
        %1384 = vadd.xlane.f32.xlu0 %v1383
        %v1385 = vpop.xlane.xlu0 %1384
        %v1386 = vrcp.pop %v1385
        %v1387 = vmul.f32 %v1382, %v1386
        %v1388 = vpack.c.bf16 %v1387, %v1387
        %1389 = vrot.lane.b32.xlu0 %v924, 48
        %v1390 = vpop.permute.xlu0 %1389
        %v1392 = vsel %vm795, %v1388, 0
        %v1395 = vsel %vm811, %v1390, 0
        %1397 = vmatprep.subr.bf16.mxu0 0
        %1398 = vmatpush1.bf16.msra.mxu0 %v1395
        %1399 = vmatprep.subr.bf16.mxu0 0
        %1400 = vmatpush1.bf16.msra.mxu0 0
        %1401 = vmatprep.subr.bf16.mxu0 0
        %1402 = vmatpush1.bf16.msra.mxu0 0
        %1403 = vmatprep.subr.bf16.mxu0 0
        %1404 = vmatpush1.bf16.msra.mxu0 0
        %1405 = vmatprep.subr.bf16.mxu0 0
        %1406 = vmatpush1.bf16.msra.mxu0 0
        %1407 = vmatprep.subr.bf16.mxu0 0
        %1408 = vmatpush1.bf16.msra.mxu0 0
        %1409 = vmatprep.subr.bf16.mxu0 0
        %1410 = vmatpush1.bf16.msra.mxu0 0
        %1411 = vmatprep.subr.bf16.mxu0 0
        %1412 = vmatpush1.bf16.msra.mxu0 0
        %1413 = vmatprep.subr.bf16.mxu0 0
        %1414 = vmatpush1.bf16.msra.mxu0 0
        %1415 = vmatprep.subr.bf16.mxu0 0
        %1416 = vmatpush1.bf16.msra.mxu0 0
        %1417 = vmatprep.subr.bf16.mxu0 0
        %1418 = vmatpush1.bf16.msra.mxu0 0
        %1419 = vmatprep.subr.bf16.mxu0 0
        %1420 = vmatpush1.bf16.msra.mxu0 0
        %1421 = vmatprep.subr.bf16.mxu0 0
        %1422 = vmatpush1.bf16.msra.mxu0 0
        %1423 = vmatprep.subr.bf16.mxu0 0
        %1424 = vmatpush1.bf16.msra.mxu0 0
        %1425 = vmatprep.subr.bf16.mxu0 0
        %1426 = vmatpush1.bf16.msra.mxu0 0
        %1427 = vmatprep.subr.bf16.mxu0 0
        %1428 = vmatpush1.bf16.msra.mxu0 0
        %1429 = vmatprep.mubr.bf16.mxu0 0
        %1430 = vmatmul.mubr.bf16.gmra.mrb[0].mxu0 %v1392
        %v1431 = vpop.f32.mrb[0].mxu0
        %v1432 = vadd.f32 0.0, %v1431
        %v1433 = vpop.f32.mrb[0].mxu0
        %v1434 = vpop.f32.mrb[0].mxu0
        %v1435 = vpop.f32.mrb[0].mxu0
        %1436 = vdwg.mxu0
        %1438 = vrot.lane.b32.xlu0 %v1432, 80
        %v1439 = vpop.permute.xlu0 %1438
        %vm1441 = vcmask 786048
        %1442 = vst.msk [vmem:[#allocation4] sm:$0xff] %vm1441, %v1439
        %1443 = vrot.lane.b32.xlu0 %v746, 32
        %v1444 = vpop.permute.xlu0 %1443
        %1445 = vrot.lane.b32.xlu0 %v861, 32
        %v1446 = vpop.permute.xlu0 %1445
        %v1448 = vsel %vm702, %v1444, 0
        %v1451 = vsel %vm702, %v1446, 0
        %1453 = vmatprep.subr.bf16.mxu0 0
        %1454 = vmatpush1.bf16.xpose.msra.mxu0 %v1451
        %1455 = vmatprep.subr.bf16.mxu0 0
        %1456 = vmatpush1.bf16.xpose.msra.mxu0 0
        %1457 = vmatprep.subr.bf16.mxu0 0
        %1458 = vmatpush1.bf16.xpose.msra.mxu0 0
        %1459 = vmatprep.subr.bf16.mxu0 0
        %1460 = vmatpush1.bf16.xpose.msra.mxu0 0
        %1461 = vmatprep.subr.bf16.mxu0 0
        %1462 = vmatpush1.bf16.xpose.msra.mxu0 0
        %1463 = vmatprep.subr.bf16.mxu0 0
        %1464 = vmatpush1.bf16.xpose.msra.mxu0 0
        %1465 = vmatprep.subr.bf16.mxu0 0
        %1466 = vmatpush1.bf16.xpose.msra.mxu0 0
        %1467 = vmatprep.subr.bf16.mxu0 0
        %1468 = vmatpush1.bf16.xpose.msra.mxu0 0
        %1469 = vmatprep.subr.bf16.mxu0 0
        %1470 = vmatpush1.bf16.xpose.msra.mxu0 0
        %1471 = vmatprep.subr.bf16.mxu0 0
        %1472 = vmatpush1.bf16.xpose.msra.mxu0 0
        %1473 = vmatprep.subr.bf16.mxu0 0
        %1474 = vmatpush1.bf16.xpose.msra.mxu0 0
        %1475 = vmatprep.subr.bf16.mxu0 0
        %1476 = vmatpush1.bf16.xpose.msra.mxu0 0
        %1477 = vmatprep.subr.bf16.mxu0 0
        %1478 = vmatpush1.bf16.xpose.msra.mxu0 0
        %1479 = vmatprep.subr.bf16.mxu0 0
        %1480 = vmatpush1.bf16.xpose.msra.mxu0 0
        %1481 = vmatprep.subr.bf16.mxu0 0
        %1482 = vmatpush1.bf16.xpose.msra.mxu0 0
        %1483 = vmatprep.subr.bf16.mxu0 0
        %1484 = vmatpush1.bf16.xpose.msra.mxu0 0
        %1485 = vmatprep.mubr.bf16.mxu0 0
        %1486 = vmatmul.mubr.bf16.gmra.mrb[0].mxu0 %v1448
        %v1487 = vpop.f32.mrb[0].mxu0
        %v1488 = vadd.f32 0.0, %v1487
        %v1489 = vpop.f32.mrb[0].mxu0
        %v1490 = vpop.f32.mrb[0].mxu0
        %v1491 = vpop.f32.mrb[0].mxu0
        %1492 = vdwg.mxu0
        %v1493 = vsel %vm795, %v1488, -inf
        %1494 = vmax.xlane.f32.xlu0 %v1493
        %v1495 = vpop.xlane.xlu0 %1494
        %v1496 = vsub.f32 %v1488, %v1495
        %v1497 = vmul.f32 %v1496, 1.442695
        %v1498 = vpow.pop %v1497
        %v1499 = vsel %vm795, %v1498, 0.0
        %1500 = vadd.xlane.f32.xlu0 %v1499
        %v1501 = vpop.xlane.xlu0 %1500
        %v1502 = vrcp.pop %v1501
        %v1503 = vmul.f32 %v1498, %v1502
        %v1504 = vpack.c.bf16 %v1503, %v1503
        %1505 = vrot.lane.b32.xlu0 %v924, 32
        %v1506 = vpop.permute.xlu0 %1505
        %v1508 = vsel %vm795, %v1504, 0
        %v1511 = vsel %vm811, %v1506, 0
        %1513 = vmatprep.subr.bf16.mxu0 0
        %1514 = vmatpush1.bf16.msra.mxu0 %v1511
        %1515 = vmatprep.subr.bf16.mxu0 0
        %1516 = vmatpush1.bf16.msra.mxu0 0
        %1517 = vmatprep.subr.bf16.mxu0 0
        %1518 = vmatpush1.bf16.msra.mxu0 0
        %1519 = vmatprep.subr.bf16.mxu0 0
        %1520 = vmatpush1.bf16.msra.mxu0 0
        %1521 = vmatprep.subr.bf16.mxu0 0
        %1522 = vmatpush1.bf16.msra.mxu0 0
        %1523 = vmatprep.subr.bf16.mxu0 0
        %1524 = vmatpush1.bf16.msra.mxu0 0
        %1525 = vmatprep.subr.bf16.mxu0 0
        %1526 = vmatpush1.bf16.msra.mxu0 0
        %1527 = vmatprep.subr.bf16.mxu0 0
        %1528 = vmatpush1.bf16.msra.mxu0 0
        %1529 = vmatprep.subr.bf16.mxu0 0
        %1530 = vmatpush1.bf16.msra.mxu0 0
        %1531 = vmatprep.subr.bf16.mxu0 0
        %1532 = vmatpush1.bf16.msra.mxu0 0
        %1533 = vmatprep.subr.bf16.mxu0 0
        %1534 = vmatpush1.bf16.msra.mxu0 0
        %1535 = vmatprep.subr.bf16.mxu0 0
        %1536 = vmatpush1.bf16.msra.mxu0 0
        %1537 = vmatprep.subr.bf16.mxu0 0
        %1538 = vmatpush1.bf16.msra.mxu0 0
        %1539 = vmatprep.subr.bf16.mxu0 0
        %1540 = vmatpush1.bf16.msra.mxu0 0
        %1541 = vmatprep.subr.bf16.mxu0 0
        %1542 = vmatpush1.bf16.msra.mxu0 0
        %1543 = vmatprep.subr.bf16.mxu0 0
        %1544 = vmatpush1.bf16.msra.mxu0 0
        %1545 = vmatprep.mubr.bf16.mxu0 0
        %1546 = vmatmul.mubr.bf16.gmra.mrb[0].mxu0 %v1508
        %v1547 = vpop.f32.mrb[0].mxu0
        %v1548 = vadd.f32 0.0, %v1547
        %v1549 = vpop.f32.mrb[0].mxu0
        %v1550 = vpop.f32.mrb[0].mxu0
        %v1551 = vpop.f32.mrb[0].mxu0
        %1552 = vdwg.mxu0
        %1554 = vrot.lane.b32.xlu0 %v1548, 96
        %v1555 = vpop.permute.xlu0 %1554
        %vm1557 = vcmask 917248
        %1558 = vst.msk [vmem:[#allocation4] sm:$0xff] %vm1557, %v1555
        %1559 = vrot.lane.b32.xlu0 %v746, 16
        %v1560 = vpop.permute.xlu0 %1559
        %1561 = vrot.lane.b32.xlu0 %v861, 16
        %v1562 = vpop.permute.xlu0 %1561
        %v1564 = vsel %vm702, %v1560, 0
        %v1567 = vsel %vm702, %v1562, 0
        %1569 = vmatprep.subr.bf16.mxu0 0
        %1570 = vmatpush1.bf16.xpose.msra.mxu0 %v1567
        %1571 = vmatprep.subr.bf16.mxu0 0
        %1572 = vmatpush1.bf16.xpose.msra.mxu0 0
        %1573 = vmatprep.subr.bf16.mxu0 0
        %1574 = vmatpush1.bf16.xpose.msra.mxu0 0
        %1575 = vmatprep.subr.bf16.mxu0 0
        %1576 = vmatpush1.bf16.xpose.msra.mxu0 0
        %1577 = vmatprep.subr.bf16.mxu0 0
        %1578 = vmatpush1.bf16.xpose.msra.mxu0 0
        %1579 = vmatprep.subr.bf16.mxu0 0
        %1580 = vmatpush1.bf16.xpose.msra.mxu0 0
        %1581 = vmatprep.subr.bf16.mxu0 0
        %1582 = vmatpush1.bf16.xpose.msra.mxu0 0
        %1583 = vmatprep.subr.bf16.mxu0 0
        %1584 = vmatpush1.bf16.xpose.msra.mxu0 0
        %1585 = vmatprep.subr.bf16.mxu0 0
        %1586 = vmatpush1.bf16.xpose.msra.mxu0 0
        %1587 = vmatprep.subr.bf16.mxu0 0
        %1588 = vmatpush1.bf16.xpose.msra.mxu0 0
        %1589 = vmatprep.subr.bf16.mxu0 0
        %1590 = vmatpush1.bf16.xpose.msra.mxu0 0
        %1591 = vmatprep.subr.bf16.mxu0 0
        %1592 = vmatpush1.bf16.xpose.msra.mxu0 0
        %1593 = vmatprep.subr.bf16.mxu0 0
        %1594 = vmatpush1.bf16.xpose.msra.mxu0 0
        %1595 = vmatprep.subr.bf16.mxu0 0
        %1596 = vmatpush1.bf16.xpose.msra.mxu0 0
        %1597 = vmatprep.subr.bf16.mxu0 0
        %1598 = vmatpush1.bf16.xpose.msra.mxu0 0
        %1599 = vmatprep.subr.bf16.mxu0 0
        %1600 = vmatpush1.bf16.xpose.msra.mxu0 0
        %1601 = vmatprep.mubr.bf16.mxu0 0
        %1602 = vmatmul.mubr.bf16.gmra.mrb[0].mxu0 %v1564
        %v1603 = vpop.f32.mrb[0].mxu0
        %v1604 = vadd.f32 0.0, %v1603
        %v1605 = vpop.f32.mrb[0].mxu0
        %v1606 = vpop.f32.mrb[0].mxu0
        %v1607 = vpop.f32.mrb[0].mxu0
        %1608 = vdwg.mxu0
        %v1609 = vsel %vm795, %v1604, -inf
        %1610 = vmax.xlane.f32.xlu0 %v1609
        %v1611 = vpop.xlane.xlu0 %1610
        %v1612 = vsub.f32 %v1604, %v1611
        %v1613 = vmul.f32 %v1612, 1.442695
        %v1614 = vpow.pop %v1613
        %v1615 = vsel %vm795, %v1614, 0.0
        %1616 = vadd.xlane.f32.xlu0 %v1615
        %v1617 = vpop.xlane.xlu0 %1616
        %v1618 = vrcp.pop %v1617
        %v1619 = vmul.f32 %v1614, %v1618
        %v1620 = vpack.c.bf16 %v1619, %v1619
        %1621 = vrot.lane.b32.xlu0 %v924, 16
        %v1622 = vpop.permute.xlu0 %1621
        %v1624 = vsel %vm795, %v1620, 0
        %v1627 = vsel %vm811, %v1622, 0
        %1629 = vmatprep.subr.bf16.mxu0 0
        %1630 = vmatpush1.bf16.msra.mxu0 %v1627
        %1631 = vmatprep.subr.bf16.mxu0 0
        %1632 = vmatpush1.bf16.msra.mxu0 0
        %1633 = vmatprep.subr.bf16.mxu0 0
        %1634 = vmatpush1.bf16.msra.mxu0 0
        %1635 = vmatprep.subr.bf16.mxu0 0
        %1636 = vmatpush1.bf16.msra.mxu0 0
        %1637 = vmatprep.subr.bf16.mxu0 0
        %1638 = vmatpush1.bf16.msra.mxu0 0
        %1639 = vmatprep.subr.bf16.mxu0 0
        %1640 = vmatpush1.bf16.msra.mxu0 0
        %1641 = vmatprep.subr.bf16.mxu0 0
        %1642 = vmatpush1.bf16.msra.mxu0 0
        %1643 = vmatprep.subr.bf16.mxu0 0
        %1644 = vmatpush1.bf16.msra.mxu0 0
        %1645 = vmatprep.subr.bf16.mxu0 0
        %1646 = vmatpush1.bf16.msra.mxu0 0
        %1647 = vmatprep.subr.bf16.mxu0 0
        %1648 = vmatpush1.bf16.msra.mxu0 0
        %1649 = vmatprep.subr.bf16.mxu0 0
        %1650 = vmatpush1.bf16.msra.mxu0 0
        %1651 = vmatprep.subr.bf16.mxu0 0
        %1652 = vmatpush1.bf16.msra.mxu0 0
        %1653 = vmatprep.subr.bf16.mxu0 0
        %1654 = vmatpush1.bf16.msra.mxu0 0
        %1655 = vmatprep.subr.bf16.mxu0 0
        %1656 = vmatpush1.bf16.msra.mxu0 0
        %1657 = vmatprep.subr.bf16.mxu0 0
        %1658 = vmatpush1.bf16.msra.mxu0 0
        %1659 = vmatprep.subr.bf16.mxu0 0
        %1660 = vmatpush1.bf16.msra.mxu0 0
        %1661 = vmatprep.mubr.bf16.mxu0 0
        %1662 = vmatmul.mubr.bf16.gmra.mrb[0].mxu0 %v1624
        %v1663 = vpop.f32.mrb[0].mxu0
        %v1664 = vadd.f32 0.0, %v1663
        %v1665 = vpop.f32.mrb[0].mxu0
        %v1666 = vpop.f32.mrb[0].mxu0
        %v1667 = vpop.f32.mrb[0].mxu0
        %1668 = vdwg.mxu0
        %1670 = vrot.lane.b32.xlu0 %v1664, 112
        %v1671 = vpop.permute.xlu0 %1670
        %vm1673 = vcmask 1048448
        %1674 = vst.msk [vmem:[#allocation4] sm:$0xff] %vm1673, %v1671
        %v1675 = vld [vmem:[#allocation4] sm:$0xff]
        %v1676 = vadd.f32 %v741, %v1675
        %v1677 = vld [vmem:[%s8] sm:$0x1]
        %v1678 = vld [vmem:[%s9] sm:$0x1]
        %1679 = vadd.xlane.f32.xlu0 %v1676
        %v1680 = vpop.xlane.xlu0 %1679
        %v1681 = vrcp.pop 128.0
        %v1682 = vmul.f32 %v1680, %v1681
        %v1683 = vsub.f32 %v1676, %v1682
        %v1684 = vmul.f32 %v1683, %v1683
        %1685 = vadd.xlane.f32.xlu0 %v1684
        %v1686 = vpop.xlane.xlu0 %1685
        %v1687 = vmul.f32 %v1686, %v1681
        %v1688 = vadd.f32 %v1687, 1e-05
        %v1689 = vrsqrt.pop %v1688
        %v1690 = vmul.f32 %v1683, %v1689
        %v1692 = vlaneseq
        %v1693 = vshrl.u32 %v1692, 7
        %v1694 = vsub.s32 0, %v1693
        %v1695 = vrot.slane %v1677, %v1694
        %v1697 = vmul.f32 %v1690, %v1695
        %v1699 = vlaneseq
        %v1700 = vshrl.u32 %v1699, 7
        %v1701 = vsub.s32 0, %v1700
        %v1702 = vrot.slane %v1678, %v1701
        %v1704 = vadd.f32 %v1697, %v1702
        %v1705 = vpack.c.bf16 %v1704, %v1704
        %v1706 = vld [vmem:[#allocation14] sm:$0xf]
        %v1707 = vld [vmem:[#allocation14 + $0x4] sm:$0xf]
        %v1708 = vld [vmem:[#allocation14 + $0x8] sm:$0xf]
        %v1709 = vld [vmem:[#allocation14 + $0xc] sm:$0xf]
        %v1710 = vld [vmem:[#allocation14 + $0x10] sm:$0xf]
        %v1711 = vld [vmem:[#allocation14 + $0x14] sm:$0xf]
        %v1712 = vld [vmem:[#allocation14 + $0x18] sm:$0xf]
        %v1713 = vld [vmem:[#allocation14 + $0x1c] sm:$0xf]
        %v1714 = vld [vmem:[#allocation14 + $0x20] sm:$0xf]
        %v1715 = vld [vmem:[#allocation14 + $0x24] sm:$0xf]
        %v1716 = vld [vmem:[#allocation14 + $0x28] sm:$0xf]
        %v1717 = vld [vmem:[#allocation14 + $0x2c] sm:$0xf]
        %v1718 = vld [vmem:[#allocation14 + $0x30] sm:$0xf]
        %v1719 = vld [vmem:[#allocation14 + $0x34] sm:$0xf]
        %v1720 = vld [vmem:[#allocation14 + $0x38] sm:$0xf]
        %v1721 = vld [vmem:[#allocation14 + $0x3c] sm:$0xf]
        %v1722 = vld [vmem:[%s7] sm:$0x1]
        %v1724 = vlaneseq
        %v1725 = vshrl.u32 %v1724, 7
        %v1726 = vsub.s32 0, %v1725
        %v1727 = vrot.slane %v1722, %v1726
        %v1745 = vunpack.c.l.b16 %v1706
        %v1746 = vunpack.c.l.b16 %v1707
        %v1747 = vunpack.c.l.b16 %v1708
        %v1748 = vunpack.c.l.b16 %v1709
        %v1749 = vunpack.c.l.b16 %v1710
        %v1750 = vunpack.c.l.b16 %v1711
        %v1751 = vunpack.c.l.b16 %v1712
        %v1752 = vunpack.c.l.b16 %v1713
        %v1753 = vunpack.c.l.b16 %v1714
        %v1754 = vunpack.c.l.b16 %v1715
        %v1755 = vunpack.c.l.b16 %v1716
        %v1756 = vunpack.c.l.b16 %v1717
        %v1757 = vunpack.c.l.b16 %v1718
        %v1758 = vunpack.c.l.b16 %v1719
        %v1759 = vunpack.c.l.b16 %v1720
        %v1760 = vunpack.c.l.b16 %v1721
        %v1761 = vpack.c.b16 %v1746, %v1745
        %v1762 = vpack.c.b16 %v1748, %v1747
        %v1763 = vpack.c.b16 %v1750, %v1749
        %v1764 = vpack.c.b16 %v1752, %v1751
        %v1765 = vpack.c.b16 %v1754, %v1753
        %v1766 = vpack.c.b16 %v1756, %v1755
        %v1767 = vpack.c.b16 %v1758, %v1757
        %v1768 = vpack.c.b16 %v1760, %v1759
        %1777 = vmatprep.subr.bf16.mxu0 0
        %1778 = vmatpush1.bf16.msra.mxu0 %v1761
        %1779 = vmatprep.subr.bf16.mxu0 0
        %1780 = vmatpush1.bf16.msra.mxu0 %v1762
        %1781 = vmatprep.subr.bf16.mxu0 0
        %1782 = vmatpush1.bf16.msra.mxu0 %v1763
        %1783 = vmatprep.subr.bf16.mxu0 0
        %1784 = vmatpush1.bf16.msra.mxu0 %v1764
        %1785 = vmatprep.subr.bf16.mxu0 0
        %1786 = vmatpush1.bf16.msra.mxu0 %v1765
        %1787 = vmatprep.subr.bf16.mxu0 0
        %1788 = vmatpush1.bf16.msra.mxu0 %v1766
        %1789 = vmatprep.subr.bf16.mxu0 0
        %1790 = vmatpush1.bf16.msra.mxu0 %v1767
        %1791 = vmatprep.subr.bf16.mxu0 0
        %1792 = vmatpush1.bf16.msra.mxu0 %v1768
        %1793 = vmatprep.subr.bf16.mxu0 0
        %1794 = vmatpush1.bf16.msra.mxu0 0
        %1795 = vmatprep.subr.bf16.mxu0 0
        %1796 = vmatpush1.bf16.msra.mxu0 0
        %1797 = vmatprep.subr.bf16.mxu0 0
        %1798 = vmatpush1.bf16.msra.mxu0 0
        %1799 = vmatprep.subr.bf16.mxu0 0
        %1800 = vmatpush1.bf16.msra.mxu0 0
        %1801 = vmatprep.subr.bf16.mxu0 0
        %1802 = vmatpush1.bf16.msra.mxu0 0
        %1803 = vmatprep.subr.bf16.mxu0 0
        %1804 = vmatpush1.bf16.msra.mxu0 0
        %1805 = vmatprep.subr.bf16.mxu0 0
        %1806 = vmatpush1.bf16.msra.mxu0 0
        %1807 = vmatprep.subr.bf16.mxu0 0
        %1808 = vmatpush1.bf16.msra.mxu0 0
        %1809 = vmatprep.mubr.bf16.mxu0 0
        %1810 = vmatmul.mubr.bf16.gmra.mrb[0].mxu0 %v1705
        %v1811 = vpop.f32.mrb[0].mxu0
        %v1812 = vadd.f32 %v1727, %v1811
        %v1813 = vpop.f32.mrb[0].mxu0
        %v1814 = vpop.f32.mrb[0].mxu0
        %v1815 = vpop.f32.mrb[0].mxu0
        %1816 = vdwg.mxu0
        %v1817 = vmax.f32 %v1812, 0.0
        %v1818 = vadd.f32 %v1704, %v1817
        %v1819 = vld [vmem:[%s10] sm:$0x1]
        %v1820 = vld [vmem:[%s11] sm:$0x1]
        %1821 = vadd.xlane.f32.xlu0 %v1818
        %v1822 = vpop.xlane.xlu0 %1821
        %v1823 = vmul.f32 %v1822, %v1681
        %v1824 = vsub.f32 %v1818, %v1823
        %v1825 = vmul.f32 %v1824, %v1824
        %1826 = vadd.xlane.f32.xlu0 %v1825
        %v1827 = vpop.xlane.xlu0 %1826
        %v1828 = vmul.f32 %v1827, %v1681
        %v1829 = vadd.f32 %v1828, 1e-05
        %v1830 = vrsqrt.pop %v1829
        %v1831 = vmul.f32 %v1824, %v1830
        %v1833 = vlaneseq
        %v1834 = vshrl.u32 %v1833, 7
        %v1835 = vsub.s32 0, %v1834
        %v1836 = vrot.slane %v1819, %v1835
        %v1838 = vmul.f32 %v1831, %v1836
        %v1840 = vlaneseq
        %v1841 = vshrl.u32 %v1840, 7
        %v1842 = vsub.s32 0, %v1841
        %v1843 = vrot.slane %v1820, %v1842
        %v1845 = vadd.f32 %v1838, %v1843
        %1846 = vst [vmem:[%s561] sm:$0xff] %v1845
        %s1847 = sand.u32 %s325, 1
        %s1848 = scalar_lea.sflag [#allocation7], %s1847
        %s1849 = sand.u32 %s325, 1
        %s1850 = smul.addr %s1849, 8
        %s1851 = scalar_lea.vmem [#allocation16], %s1850
        // Predicated region
        $region97: #{tpu_custom_call.1} parent=67 // pred_check
          %p1852 = pneg %p335
        $region98: #{tpu_custom_call.1} parent=67 // pred_check_branch
          %1854 = sbr.rel (%p1852) target = $region100
        $region99: #{tpu_custom_call.1} parent=67 // pred_region
          %s1856 = ssub.s32 128, 128
          %1857 = vsyncadd %s1848, %s1856
          %s1858 = smul.addr %s38, 2
          %s1859 = sadd.s32 %s39, %s1858
          %s1860 = smul.addr %s1859, 128
          %s1861 = scalar_lea.hbm %s12, %s1860
          %s1863 = sshll.u32 %s1851, 4
          %s1864 = int_to_ptr.vmem [resolvable:$true] %s1863
          %1866 = dma.vmem_to_hbm [thread:$0]  %s1864, 128, %s1861, %s1848
        $region100: #{tpu_custom_call.1} parent=67 // pred_fallthru
          _
      $region68: #{tpu_custom_call.1} parent=5 // pred_fallthru
        _
      %p1867 = scmp.le.s32.totalorder 2, %s29
      // Predicated region
      $region101: #{tpu_custom_call.1} parent=5 // pred_check
        %p1868 = pneg %p1867
      $region102: #{tpu_custom_call.1} parent=5 // pred_check_branch
        %1870 = sbr.rel (%p1868) target = $region104
      $region103: #{tpu_custom_call.1} parent=5 // pred_region
        %s1871 = ssub.s32 %s29, 2
        // Predicated region
        $region105: #{tpu_custom_call.1} parent=103 // pred_check
          %p1872 = pneg %p341
        $region106: #{tpu_custom_call.1} parent=103 // pred_check_branch
          %1874 = sbr.rel (%p1872) target = $region108
        $region107: #{tpu_custom_call.1} parent=103 // pred_region
          %s1875 = sand.u32 %s326, 1
          %s1876 = scalar_lea.sflag [#allocation7], %s1875
          %s1877 = sand.u32 %s326, 1
          %s1878 = smul.addr %s1877, 8
          %s1879 = scalar_lea.vmem [#allocation16], %s1878
          %1880 = dma.done %s1876, 128
        $region108: #{tpu_custom_call.1} parent=103 // pred_fallthru
          _
      $region104: #{tpu_custom_call.1} parent=5 // pred_fallthru
        _
    $region6: #{tpu_custom_call.1} parent=1 // loop_footer
      %s33 = sadd.s32 1, %s29
    $region7: #{tpu_custom_call.1} parent=1 // loop_footer_branch
      %28 = sbr.rel target = $region3
    $region8: #{tpu_custom_call.1} parent=1 // loop_exit
      _
    %1881 = vsyncpa [#allocation6], 1
    %s1882 = scalar_lea.sflag [#allocation6], 1
    %1883 = vsyncpa %s1882, 1
    %1884 = vsyncpa [#allocation9], 1
    %s1885 = scalar_lea.sflag [#allocation9], 1
    %1886 = vsyncpa %s1885, 1
    %1887 = vsyncpa [#allocation12], 1
    %1888 = vsyncpa [#allocation15], 1
    %1889 = vsyncpa [#allocation7], 1
    %s1890 = scalar_lea.sflag [#allocation7], 1
    %1891 = vsyncpa %s1890, 1

</llo_original>
